<compile_context>
chip_gen: v5e
topology: v5e:2x2
jax: 0.10.0
libtpu: 0.0.40
codegen_flags: <defaults>
</compile_context>

<pallas_src>
import jax
import jax.numpy as jnp
from jax import lax
from jax.experimental import pallas as pl
from jax.experimental.pallas import tpu as pltpu

LEAKY_SLOPE = 0.01  # PyTorch F.leaky_relu default


def _sigmoid(x):
    # sigmoid(x) == 0.5 * tanh(0.5 * x) + 0.5  -> single EUP op per gate set.
    return 0.5 * jnp.tanh(0.5 * x) + 0.5


def _leaky_relu(x):
    return jnp.where(x >= 0, x, LEAKY_SLOPE * x)


def _lstm_recurrence(zx_scr, y_scr, w_hh, T, B, Hs):
    """h_t = LSTM(zx_t, h_{t-1}); zx_t already contains x_t @ W_ih + b.

    zx_scr: VMEM ref (T, B, 4*Hs) — precomputed input projections (time-major).
    y_scr : VMEM ref (T, B, Hs)   — per-step hidden outputs.
    """
    def step(t, carry):
        h, c = carry                                              # (B, Hs) each
        z = zx_scr[t] + jnp.dot(h, w_hh,
                                preferred_element_type=jnp.float32)  # (B, 4Hs)
        i_g = _sigmoid(z[:, 0 * Hs:1 * Hs])
        f_g = _sigmoid(z[:, 1 * Hs:2 * Hs])
        g_g = jnp.tanh(z[:, 2 * Hs:3 * Hs])
        o_g = _sigmoid(z[:, 3 * Hs:4 * Hs])
        c_new = f_g * c + i_g * g_g
        h_new = o_g * jnp.tanh(c_new)
        y_scr[t] = h_new
        return (h_new, c_new)

    init = (jnp.zeros((B, Hs), jnp.float32), jnp.zeros((B, Hs), jnp.float32))
    lax.fori_loop(0, T, step, init, unroll=True)


def _fused_forward_kernel(
    x_ref,                                             # (B, T, D)
    enc_wih_ref, enc_whh_ref, enc_b_ref,               # (D,4H), (H,4H), (1,4H)
    enc_fcw_ref, enc_fcb_ref,                          # (H,H), (1,H)
    dec_fcw_ref, dec_fcb_ref,                          # (H,H), (1,H)
    dec_wih_ref, dec_whh_ref, dec_b_ref,               # (H,4D), (D,4D), (1,4D)
    out_ref,                                           # (B, T, D)
    zx_enc_scr,                                        # (T, B, 4H)
    h_enc_scr,                                         # (T, B, H)
    zx_dec_scr,                                        # (T, B, 4D)
    h_dec_scr,                                         # (T, B, D)
):
    B, T, D = x_ref.shape
    H = enc_whh_ref.shape[0]

    # ---- Phase 1: hoisted encoder input projection (big GEMM per sequence). ----
    enc_wih = enc_wih_ref[...]
    enc_b = enc_b_ref[...]
    for b in range(B):                                           # static unroll
        zx_b = jnp.dot(x_ref[b], enc_wih,
                       preferred_element_type=jnp.float32) + enc_b   # (T, 4H)
        zx_enc_scr[:, b, :] = zx_b

    # ---- Phase 2: encoder recurrence (only h @ W_hh inside the loop). ----
    _lstm_recurrence(zx_enc_scr, h_enc_scr, enc_whh_ref[...], T, B, H)

    # ---- Phase 3: encoder FC -> leaky, decoder FC -> leaky, decoder input proj. ----
    enc_fcw = enc_fcw_ref[...]
    enc_fcb = enc_fcb_ref[...]
    dec_fcw = dec_fcw_ref[...]
    dec_fcb = dec_fcb_ref[...]
    dec_wih = dec_wih_ref[...]
    dec_b = dec_b_ref[...]
    for b in range(B):
        h_b = h_enc_scr[:, b, :]                                 # (T, H)
        e_b = _leaky_relu(jnp.dot(h_b, enc_fcw,
                                  preferred_element_type=jnp.float32) + enc_fcb)
        d_b = _leaky_relu(jnp.dot(e_b, dec_fcw,
                                  preferred_element_type=jnp.float32) + dec_fcb)
        zx_dec_scr[:, b, :] = (jnp.dot(d_b, dec_wih,
                                       preferred_element_type=jnp.float32) + dec_b)

    # ---- Phase 4: decoder recurrence (hidden size == input_size D). ----
    _lstm_recurrence(zx_dec_scr, h_dec_scr, dec_whh_ref[...], T, B, D)

    # ---- Phase 5: write batch-first output (no HBM transpose in the wrapper). ----
    for b in range(B):
        out_ref[b] = h_dec_scr[:, b, :].astype(out_ref.dtype)


@jax.jit
def recurrent_autoencoder_forward(x_btd, params):
    """x_btd: (B, T, input_size) -> (B*T, input_size)."""
    B, T, D = x_btd.shape
    H = params["enc_w_hh"].shape[0]

    out_btd = pl.pallas_call(
        _fused_forward_kernel,
        out_shape=jax.ShapeDtypeStruct((B, T, D), jnp.float32),
        scratch_shapes=[
            pltpu.VMEM((T, B, 4 * H), jnp.float32),   # encoder input projections
            pltpu.VMEM((T, B, H), jnp.float32),       # encoder hidden states
            pltpu.VMEM((T, B, 4 * D), jnp.float32),   # decoder input projections
            pltpu.VMEM((T, B, D), jnp.float32),       # decoder hidden states
        ],
        compiler_params=pltpu.CompilerParams(
            vmem_limit_bytes=32 * 1024 * 1024),
    )(
        x_btd,
        params["enc_w_ih"], params["enc_w_hh"], params["enc_b"],
        params["enc_fc_w"], params["enc_fc_b"],
        params["dec_fc_w"], params["dec_fc_b"],
        params["dec_w_ih"], params["dec_w_hh"], params["dec_b"],
    )
    # .squeeze().view(-1, input_size) — for B, T > 1 the squeeze is a no-op.
    return out_btd.reshape(-1, D)


# ----------------------------------------------------------------------------
# Parameter init (transposed layout, combined b_ih + b_hh as one bias).
# ----------------------------------------------------------------------------
def init_params(key, input_size, hidden_size):
    ks = jax.random.split(key, 10)

    def u(k, shape, scale):
        return jax.random.uniform(k, shape, jnp.float32, -scale, scale)

    sh = 1.0 / jnp.sqrt(hidden_size)
    si = 1.0 / jnp.sqrt(input_size)
    return {
        # encoder LSTM: input_size -> hidden_size
        "enc_w_ih": u(ks[0], (input_size, 4 * hidden_size), sh),
        "enc_w_hh": u(ks[1], (hidden_size, 4 * hidden_size), sh),
        "enc_b":    u(ks[2], (1, 4 * hidden_size), sh),
        # encoder FC: hidden -> hidden
        "enc_fc_w": u(ks[3], (hidden_size, hidden_size), sh),
        "enc_fc_b": u(ks[4], (1, hidden_size), sh),
        # decoder FC: hidden -> hidden
        "dec_fc_w": u(ks[5], (hidden_size, hidden_size), sh),
        "dec_fc_b": u(ks[6], (1, hidden_size), sh),
        # decoder LSTM: hidden_size -> input_size
        "dec_w_ih": u(ks[7], (hidden_size, 4 * input_size), si),
        "dec_w_hh": u(ks[8], (input_size, 4 * input_size), si),
        "dec_b":    u(ks[9], (1, 4 * input_size), si),
    }


# ----------------------------------------------------------------------------
# Pure-JAX reference (lax.scan LSTM, exp-based sigmoid) for correctness checking.
# ----------------------------------------------------------------------------
def _lstm_ref(x_btd, w_ih, w_hh, b):
    B, T, _ = x_btd.shape
    H = w_hh.shape[0]

    def step(carry, x_t):
        h, c = carry
        z = x_t @ w_ih + h @ w_hh + b
        i_g = jax.nn.sigmoid(z[:, :H])
        f_g = jax.nn.sigmoid(z[:, H:2 * H])
        g_g = jnp.tanh(z[:, 2 * H:3 * H])
        o_g = jax.nn.sigmoid(z[:, 3 * H:])
        c = f_g * c + i_g * g_g
        h = o_g * jnp.tanh(c)
        return (h, c), h

    init = (jnp.zeros((B, H), jnp.float32), jnp.zeros((B, H), jnp.float32))
    _, hs = lax.scan(step, init, jnp.transpose(x_btd, (1, 0, 2)))
    return jnp.transpose(hs, (1, 0, 2))


def reference_forward(x_btd, params):
    B, T, D = x_btd.shape
    h = _lstm_ref(x_btd, params["enc_w_ih"], params["enc_w_hh"], params["enc_b"])
    e = _leaky_relu(h @ params["enc_fc_w"] + params["enc_fc_b"])
    d = _leaky_relu(e @ params["dec_fc_w"] + params["dec_fc_b"])
    o = _lstm_ref(d, params["dec_w_ih"], params["dec_w_hh"], params["dec_b"])
    return o.reshape(-1, D)


if __name__ == "__main__":
    B, T, INPUT_SIZE, HIDDEN_SIZE = 2, 8, 8, 32

    key = jax.random.PRNGKey(0)
    k_x, k_p = jax.random.split(key)
    x = jax.random.normal(k_x, (B, T, INPUT_SIZE), jnp.float32)
    params = init_params(k_p, INPUT_SIZE, HIDDEN_SIZE)

    out = recurrent_autoencoder_forward(x, params)
    out = jax.block_until_ready(out)

    ref = reference_forward(x, params)
    assert out.shape == (B * T, INPUT_SIZE), out.shape
    assert jnp.allclose(out, ref, atol=1e-4, rtol=1e-4), \
        float(jnp.max(jnp.abs(out - ref)))

    print("KERNEL_OK")
</pallas_src>

<mosaic_0001>
module attributes {stable_mosaic.version = 11 : i64} {
  func.func @_fused_forward_kernel(%arg0: memref<2x8x8xf32, #tpu.memory_space<vmem>>, %arg1: memref<8x128xf32, #tpu.memory_space<vmem>>, %arg2: memref<32x128xf32, #tpu.memory_space<vmem>>, %arg3: memref<1x128xf32, #tpu.memory_space<vmem>>, %arg4: memref<32x32xf32, #tpu.memory_space<vmem>>, %arg5: memref<1x32xf32, #tpu.memory_space<vmem>>, %arg6: memref<32x32xf32, #tpu.memory_space<vmem>>, %arg7: memref<1x32xf32, #tpu.memory_space<vmem>>, %arg8: memref<32x32xf32, #tpu.memory_space<vmem>>, %arg9: memref<8x32xf32, #tpu.memory_space<vmem>>, %arg10: memref<1x32xf32, #tpu.memory_space<vmem>>, %arg11: memref<2x8x8xf32, #tpu.memory_space<vmem>>, %arg12: memref<8x2x128xf32, #tpu.memory_space<vmem>>, %arg13: memref<8x2x32xf32, #tpu.memory_space<vmem>>, %arg14: memref<8x2x32xf32, #tpu.memory_space<vmem>>, %arg15: memref<8x2x8xf32, #tpu.memory_space<vmem>>) attributes {dimension_semantics = [], scalar_prefetch = 0 : i64, scratch_operands = 4 : i64, tpu.core_type = #tpu.core_type<tc>} {
    %c0 = arith.constant 0 : index
    %c0_0 = arith.constant 0 : index
    %0 = vector.load %arg1[%c0, %c0_0] : memref<8x128xf32, #tpu.memory_space<vmem>>, vector<8x128xf32>
    %c0_1 = arith.constant 0 : index
    %c0_2 = arith.constant 0 : index
    %1 = vector.load %arg3[%c0_1, %c0_2] : memref<1x128xf32, #tpu.memory_space<vmem>>, vector<1x128xf32>
    %c0_3 = arith.constant 0 : index
    %c0_4 = arith.constant 0 : index
    %c0_5 = arith.constant 0 : index
    %2 = vector.load %arg0[%c0_3, %c0_4, %c0_5] : memref<2x8x8xf32, #tpu.memory_space<vmem>>, vector<1x8x8xf32>
    %3 = vector.shape_cast %2 : vector<1x8x8xf32> to vector<8x8xf32>
    %cst = arith.constant dense<0.000000e+00> : vector<8x128xf32>
    %4 = tpu.matmul %3, %0, %cst {dimension_numbers = #tpu.dot_dimension_numbers<[1], [0], [0], [1], [0, 0, 1, 1], [], []>} : vector<8x8xf32>, vector<8x128xf32>, vector<8x128xf32> -> vector<8x128xf32>
    %5 = vector.broadcast %1 : vector<1x128xf32> to vector<8x128xf32>
    %6 = arith.addf %4, %5 : vector<8x128xf32>
    %c0_6 = arith.constant 0 : index
    %c0_7 = arith.constant 0 : index
    %c0_8 = arith.constant 0 : index
    %7 = vector.load %arg12[%c0_6, %c0_7, %c0_8] : memref<8x2x128xf32, #tpu.memory_space<vmem>>, vector<8x1x128xf32>
    %8 = vector.shape_cast %7 : vector<8x1x128xf32> to vector<8x128xf32>
    %9 = vector.shape_cast %6 : vector<8x128xf32> to vector<8x1x128xf32>
    tpu.vector_store %arg12[%c0_6, %c0_7, %c0_8], %9 {strides = array<i32>} : memref<8x2x128xf32, #tpu.memory_space<vmem>>, vector<8x1x128xf32>,
    %c1 = arith.constant 1 : index
    %c0_9 = arith.constant 0 : index
    %c0_10 = arith.constant 0 : index
    %10 = vector.load %arg0[%c1, %c0_9, %c0_10] : memref<2x8x8xf32, #tpu.memory_space<vmem>>, vector<1x8x8xf32>
    %11 = vector.shape_cast %10 : vector<1x8x8xf32> to vector<8x8xf32>
    %cst_11 = arith.constant dense<0.000000e+00> : vector<8x128xf32>
    %12 = tpu.matmul %11, %0, %cst_11 {dimension_numbers = #tpu.dot_dimension_numbers<[1], [0], [0], [1], [0, 0, 1, 1], [], []>} : vector<8x8xf32>, vector<8x128xf32>, vector<8x128xf32> -> vector<8x128xf32>
    %13 = vector.broadcast %1 : vector<1x128xf32> to vector<8x128xf32>
    %14 = arith.addf %12, %13 : vector<8x128xf32>
    %c0_12 = arith.constant 0 : index
    %c1_13 = arith.constant 1 : index
    %c0_14 = arith.constant 0 : index
    %15 = vector.load %arg12[%c0_12, %c1_13, %c0_14] : memref<8x2x128xf32, #tpu.memory_space<vmem>>, vector<8x1x128xf32>
    %16 = vector.shape_cast %15 : vector<8x1x128xf32> to vector<8x128xf32>
    %17 = vector.shape_cast %14 : vector<8x128xf32> to vector<8x1x128xf32>
    tpu.vector_store %arg12[%c0_12, %c1_13, %c0_14], %17 {strides = array<i32>} : memref<8x2x128xf32, #tpu.memory_space<vmem>>, vector<8x1x128xf32>,
    %c0_15 = arith.constant 0 : index
    %c0_16 = arith.constant 0 : index
    %18 = vector.load %arg2[%c0_15, %c0_16] : memref<32x128xf32, #tpu.memory_space<vmem>>, vector<32x128xf32>
    %cst_17 = arith.constant 0.000000e+00 : f32
    %19 = vector.broadcast %cst_17 : f32 to vector<2x32xf32>
    %cst_18 = arith.constant 0.000000e+00 : f32
    %20 = vector.broadcast %cst_18 : f32 to vector<2x32xf32>
    %c0_i32 = arith.constant 0 : i32
    %21 = arith.index_cast %c0_i32 : i32 to index
    %c0_19 = arith.constant 0 : index
    %c0_20 = arith.constant 0 : index
    %22 = vector.load %arg12[%21, %c0_19, %c0_20] : memref<8x2x128xf32, #tpu.memory_space<vmem>>, vector<1x2x128xf32>
    %23 = vector.shape_cast %22 : vector<1x2x128xf32> to vector<2x128xf32>
    %cst_21 = arith.constant dense<0.000000e+00> : vector<2x128xf32>
    %24 = tpu.matmul %19, %18, %cst_21 {dimension_numbers = #tpu.dot_dimension_numbers<[1], [0], [0], [1], [0, 0, 1, 1], [], []>} : vector<2x32xf32>, vector<32x128xf32>, vector<2x128xf32> -> vector<2x128xf32>
    %25 = arith.addf %23, %24 : vector<2x128xf32>
    %26 = vector.extract_strided_slice %25 {offsets = [0, 0], sizes = [2, 32], strides = [1, 1]} : vector<2x128xf32> to vector<2x32xf32>
    %cst_22 = arith.constant 5.000000e-01 : f32
    %27 = vector.broadcast %cst_22 : f32 to vector<2x32xf32>
    %28 = arith.mulf %27, %26 : vector<2x32xf32>
    %29 = math.tanh %28 : vector<2x32xf32>
    %cst_23 = arith.constant 5.000000e-01 : f32
    %30 = vector.broadcast %cst_23 : f32 to vector<2x32xf32>
    %31 = arith.mulf %30, %29 : vector<2x32xf32>
    %cst_24 = arith.constant 5.000000e-01 : f32
    %32 = vector.broadcast %cst_24 : f32 to vector<2x32xf32>
    %33 = arith.addf %31, %32 : vector<2x32xf32>
    %34 = vector.extract_strided_slice %25 {offsets = [0, 32], sizes = [2, 32], strides = [1, 1]} : vector<2x128xf32> to vector<2x32xf32>
    %cst_25 = arith.constant 5.000000e-01 : f32
    %35 = vector.broadcast %cst_25 : f32 to vector<2x32xf32>
    %36 = arith.mulf %35, %34 : vector<2x32xf32>
    %37 = math.tanh %36 : vector<2x32xf32>
    %cst_26 = arith.constant 5.000000e-01 : f32
    %38 = vector.broadcast %cst_26 : f32 to vector<2x32xf32>
    %39 = arith.mulf %38, %37 : vector<2x32xf32>
    %cst_27 = arith.constant 5.000000e-01 : f32
    %40 = vector.broadcast %cst_27 : f32 to vector<2x32xf32>
    %41 = arith.addf %39, %40 : vector<2x32xf32>
    %42 = vector.extract_strided_slice %25 {offsets = [0, 64], sizes = [2, 32], strides = [1, 1]} : vector<2x128xf32> to vector<2x32xf32>
    %43 = math.tanh %42 : vector<2x32xf32>
    %44 = vector.extract_strided_slice %25 {offsets = [0, 96], sizes = [2, 32], strides = [1, 1]} : vector<2x128xf32> to vector<2x32xf32>
    %cst_28 = arith.constant 5.000000e-01 : f32
    %45 = vector.broadcast %cst_28 : f32 to vector<2x32xf32>
    %46 = arith.mulf %45, %44 : vector<2x32xf32>
    %47 = math.tanh %46 : vector<2x32xf32>
    %cst_29 = arith.constant 5.000000e-01 : f32
    %48 = vector.broadcast %cst_29 : f32 to vector<2x32xf32>
    %49 = arith.mulf %48, %47 : vector<2x32xf32>
    %cst_30 = arith.constant 5.000000e-01 : f32
    %50 = vector.broadcast %cst_30 : f32 to vector<2x32xf32>
    %51 = arith.addf %49, %50 : vector<2x32xf32>
    %52 = arith.mulf %41, %20 : vector<2x32xf32>
    %53 = arith.mulf %33, %43 : vector<2x32xf32>
    %54 = arith.addf %52, %53 : vector<2x32xf32>
    %55 = math.tanh %54 : vector<2x32xf32>
    %56 = arith.mulf %51, %55 : vector<2x32xf32>
    %57 = arith.index_cast %c0_i32 : i32 to index
    %c0_31 = arith.constant 0 : index
    %c0_32 = arith.constant 0 : index
    %58 = vector.load %arg13[%57, %c0_31, %c0_32] : memref<8x2x32xf32, #tpu.memory_space<vmem>>, vector<1x2x32xf32>
    %59 = vector.shape_cast %58 : vector<1x2x32xf32> to vector<2x32xf32>
    %60 = vector.shape_cast %56 : vector<2x32xf32> to vector<1x2x32xf32>
    tpu.vector_store %arg13[%57, %c0_31, %c0_32], %60 {strides = array<i32>} : memref<8x2x32xf32, #tpu.memory_space<vmem>>, vector<1x2x32xf32>,
    %c1_i32 = arith.constant 1 : i32
    %61 = arith.index_cast %c1_i32 : i32 to index
    %c0_33 = arith.constant 0 : index
    %c0_34 = arith.constant 0 : index
    %62 = vector.load %arg12[%61, %c0_33, %c0_34] : memref<8x2x128xf32, #tpu.memory_space<vmem>>, vector<1x2x128xf32>
    %63 = vector.shape_cast %62 : vector<1x2x128xf32> to vector<2x128xf32>
    %cst_35 = arith.constant dense<0.000000e+00> : vector<2x128xf32>
    %64 = tpu.matmul %56, %18, %cst_35 {dimension_numbers = #tpu.dot_dimension_numbers<[1], [0], [0], [1], [0, 0, 1, 1], [], []>} : vector<2x32xf32>, vector<32x128xf32>, vector<2x128xf32> -> vector<2x128xf32>
    %65 = arith.addf %63, %64 : vector<2x128xf32>
    %66 = vector.extract_strided_slice %65 {offsets = [0, 0], sizes = [2, 32], strides = [1, 1]} : vector<2x128xf32> to vector<2x32xf32>
    %cst_36 = arith.constant 5.000000e-01 : f32
    %67 = vector.broadcast %cst_36 : f32 to vector<2x32xf32>
    %68 = arith.mulf %67, %66 : vector<2x32xf32>
    %69 = math.tanh %68 : vector<2x32xf32>
    %cst_37 = arith.constant 5.000000e-01 : f32
    %70 = vector.broadcast %cst_37 : f32 to vector<2x32xf32>
    %71 = arith.mulf %70, %69 : vector<2x32xf32>
    %cst_38 = arith.constant 5.000000e-01 : f32
    %72 = vector.broadcast %cst_38 : f32 to vector<2x32xf32>
    %73 = arith.addf %71, %72 : vector<2x32xf32>
    %74 = vector.extract_strided_slice %65 {offsets = [0, 32], sizes = [2, 32], strides = [1, 1]} : vector<2x128xf32> to vector<2x32xf32>
    %cst_39 = arith.constant 5.000000e-01 : f32
    %75 = vector.broadcast %cst_39 : f32 to vector<2x32xf32>
    %76 = arith.mulf %75, %74 : vector<2x32xf32>
    %77 = math.tanh %76 : vector<2x32xf32>
    %cst_40 = arith.constant 5.000000e-01 : f32
    %78 = vector.broadcast %cst_40 : f32 to vector<2x32xf32>
    %79 = arith.mulf %78, %77 : vector<2x32xf32>
    %cst_41 = arith.constant 5.000000e-01 : f32
    %80 = vector.broadcast %cst_41 : f32 to vector<2x32xf32>
    %81 = arith.addf %79, %80 : vector<2x32xf32>
    %82 = vector.extract_strided_slice %65 {offsets = [0, 64], sizes = [2, 32], strides = [1, 1]} : vector<2x128xf32> to vector<2x32xf32>
    %83 = math.tanh %82 : vector<2x32xf32>
    %84 = vector.extract_strided_slice %65 {offsets = [0, 96], sizes = [2, 32], strides = [1, 1]} : vector<2x128xf32> to vector<2x32xf32>
    %cst_42 = arith.constant 5.000000e-01 : f32
    %85 = vector.broadcast %cst_42 : f32 to vector<2x32xf32>
    %86 = arith.mulf %85, %84 : vector<2x32xf32>
    %87 = math.tanh %86 : vector<2x32xf32>
    %cst_43 = arith.constant 5.000000e-01 : f32
    %88 = vector.broadcast %cst_43 : f32 to vector<2x32xf32>
    %89 = arith.mulf %88, %87 : vector<2x32xf32>
    %cst_44 = arith.constant 5.000000e-01 : f32
    %90 = vector.broadcast %cst_44 : f32 to vector<2x32xf32>
    %91 = arith.addf %89, %90 : vector<2x32xf32>
    %92 = arith.mulf %81, %54 : vector<2x32xf32>
    %93 = arith.mulf %73, %83 : vector<2x32xf32>
    %94 = arith.addf %92, %93 : vector<2x32xf32>
    %95 = math.tanh %94 : vector<2x32xf32>
    %96 = arith.mulf %91, %95 : vector<2x32xf32>
    %97 = arith.index_cast %c1_i32 : i32 to index
    %c0_45 = arith.constant 0 : index
    %c0_46 = arith.constant 0 : index
    %98 = vector.load %arg13[%97, %c0_45, %c0_46] : memref<8x2x32xf32, #tpu.memory_space<vmem>>, vector<1x2x32xf32>
    %99 = vector.shape_cast %98 : vector<1x2x32xf32> to vector<2x32xf32>
    %100 = vector.shape_cast %96 : vector<2x32xf32> to vector<1x2x32xf32>
    tpu.vector_store %arg13[%97, %c0_45, %c0_46], %100 {strides = array<i32>} : memref<8x2x32xf32, #tpu.memory_space<vmem>>, vector<1x2x32xf32>,
    %c2_i32 = arith.constant 2 : i32
    %101 = arith.index_cast %c2_i32 : i32 to index
    %c0_47 = arith.constant 0 : index
    %c0_48 = arith.constant 0 : index
    %102 = vector.load %arg12[%101, %c0_47, %c0_48] : memref<8x2x128xf32, #tpu.memory_space<vmem>>, vector<1x2x128xf32>
    %103 = vector.shape_cast %102 : vector<1x2x128xf32> to vector<2x128xf32>
    %cst_49 = arith.constant dense<0.000000e+00> : vector<2x128xf32>
    %104 = tpu.matmul %96, %18, %cst_49 {dimension_numbers = #tpu.dot_dimension_numbers<[1], [0], [0], [1], [0, 0, 1, 1], [], []>} : vector<2x32xf32>, vector<32x128xf32>, vector<2x128xf32> -> vector<2x128xf32>
    %105 = arith.addf %103, %104 : vector<2x128xf32>
    %106 = vector.extract_strided_slice %105 {offsets = [0, 0], sizes = [2, 32], strides = [1, 1]} : vector<2x128xf32> to vector<2x32xf32>
    %cst_50 = arith.constant 5.000000e-01 : f32
    %107 = vector.broadcast %cst_50 : f32 to vector<2x32xf32>
    %108 = arith.mulf %107, %106 : vector<2x32xf32>
    %109 = math.tanh %108 : vector<2x32xf32>
    %cst_51 = arith.constant 5.000000e-01 : f32
    %110 = vector.broadcast %cst_51 : f32 to vector<2x32xf32>
    %111 = arith.mulf %110, %109 : vector<2x32xf32>
    %cst_52 = arith.constant 5.000000e-01 : f32
    %112 = vector.broadcast %cst_52 : f32 to vector<2x32xf32>
    %113 = arith.addf %111, %112 : vector<2x32xf32>
    %114 = vector.extract_strided_slice %105 {offsets = [0, 32], sizes = [2, 32], strides = [1, 1]} : vector<2x128xf32> to vector<2x32xf32>
    %cst_53 = arith.constant 5.000000e-01 : f32
    %115 = vector.broadcast %cst_53 : f32 to vector<2x32xf32>
    %116 = arith.mulf %115, %114 : vector<2x32xf32>
    %117 = math.tanh %116 : vector<2x32xf32>
    %cst_54 = arith.constant 5.000000e-01 : f32
    %118 = vector.broadcast %cst_54 : f32 to vector<2x32xf32>
    %119 = arith.mulf %118, %117 : vector<2x32xf32>
    %cst_55 = arith.constant 5.000000e-01 : f32
    %120 = vector.broadcast %cst_55 : f32 to vector<2x32xf32>
    %121 = arith.addf %119, %120 : vector<2x32xf32>
    %122 = vector.extract_strided_slice %105 {offsets = [0, 64], sizes = [2, 32], strides = [1, 1]} : vector<2x128xf32> to vector<2x32xf32>
    %123 = math.tanh %122 : vector<2x32xf32>
    %124 = vector.extract_strided_slice %105 {offsets = [0, 96], sizes = [2, 32], strides = [1, 1]} : vector<2x128xf32> to vector<2x32xf32>
    %cst_56 = arith.constant 5.000000e-01 : f32
    %125 = vector.broadcast %cst_56 : f32 to vector<2x32xf32>
    %126 = arith.mulf %125, %124 : vector<2x32xf32>
    %127 = math.tanh %126 : vector<2x32xf32>
    %cst_57 = arith.constant 5.000000e-01 : f32
    %128 = vector.broadcast %cst_57 : f32 to vector<2x32xf32>
    %129 = arith.mulf %128, %127 : vector<2x32xf32>
    %cst_58 = arith.constant 5.000000e-01 : f32
    %130 = vector.broadcast %cst_58 : f32 to vector<2x32xf32>
    %131 = arith.addf %129, %130 : vector<2x32xf32>
    %132 = arith.mulf %121, %94 : vector<2x32xf32>
    %133 = arith.mulf %113, %123 : vector<2x32xf32>
    %134 = arith.addf %132, %133 : vector<2x32xf32>
    %135 = math.tanh %134 : vector<2x32xf32>
    %136 = arith.mulf %131, %135 : vector<2x32xf32>
    %137 = arith.index_cast %c2_i32 : i32 to index
    %c0_59 = arith.constant 0 : index
    %c0_60 = arith.constant 0 : index
    %138 = vector.load %arg13[%137, %c0_59, %c0_60] : memref<8x2x32xf32, #tpu.memory_space<vmem>>, vector<1x2x32xf32>
    %139 = vector.shape_cast %138 : vector<1x2x32xf32> to vector<2x32xf32>
    %140 = vector.shape_cast %136 : vector<2x32xf32> to vector<1x2x32xf32>
    tpu.vector_store %arg13[%137, %c0_59, %c0_60], %140 {strides = array<i32>} : memref<8x2x32xf32, #tpu.memory_space<vmem>>, vector<1x2x32xf32>,
    %c3_i32 = arith.constant 3 : i32
    %141 = arith.index_cast %c3_i32 : i32 to index
    %c0_61 = arith.constant 0 : index
    %c0_62 = arith.constant 0 : index
    %142 = vector.load %arg12[%141, %c0_61, %c0_62] : memref<8x2x128xf32, #tpu.memory_space<vmem>>, vector<1x2x128xf32>
    %143 = vector.shape_cast %142 : vector<1x2x128xf32> to vector<2x128xf32>
    %cst_63 = arith.constant dense<0.000000e+00> : vector<2x128xf32>
    %144 = tpu.matmul %136, %18, %cst_63 {dimension_numbers = #tpu.dot_dimension_numbers<[1], [0], [0], [1], [0, 0, 1, 1], [], []>} : vector<2x32xf32>, vector<32x128xf32>, vector<2x128xf32> -> vector<2x128xf32>
    %145 = arith.addf %143, %144 : vector<2x128xf32>
    %146 = vector.extract_strided_slice %145 {offsets = [0, 0], sizes = [2, 32], strides = [1, 1]} : vector<2x128xf32> to vector<2x32xf32>
    %cst_64 = arith.constant 5.000000e-01 : f32
    %147 = vector.broadcast %cst_64 : f32 to vector<2x32xf32>
    %148 = arith.mulf %147, %146 : vector<2x32xf32>
    %149 = math.tanh %148 : vector<2x32xf32>
    %cst_65 = arith.constant 5.000000e-01 : f32
    %150 = vector.broadcast %cst_65 : f32 to vector<2x32xf32>
    %151 = arith.mulf %150, %149 : vector<2x32xf32>
    %cst_66 = arith.constant 5.000000e-01 : f32
    %152 = vector.broadcast %cst_66 : f32 to vector<2x32xf32>
    %153 = arith.addf %151, %152 : vector<2x32xf32>
    %154 = vector.extract_strided_slice %145 {offsets = [0, 32], sizes = [2, 32], strides = [1, 1]} : vector<2x128xf32> to vector<2x32xf32>
    %cst_67 = arith.constant 5.000000e-01 : f32
    %155 = vector.broadcast %cst_67 : f32 to vector<2x32xf32>
    %156 = arith.mulf %155, %154 : vector<2x32xf32>
    %157 = math.tanh %156 : vector<2x32xf32>
    %cst_68 = arith.constant 5.000000e-01 : f32
    %158 = vector.broadcast %cst_68 : f32 to vector<2x32xf32>
    %159 = arith.mulf %158, %157 : vector<2x32xf32>
    %cst_69 = arith.constant 5.000000e-01 : f32
    %160 = vector.broadcast %cst_69 : f32 to vector<2x32xf32>
    %161 = arith.addf %159, %160 : vector<2x32xf32>
    %162 = vector.extract_strided_slice %145 {offsets = [0, 64], sizes = [2, 32], strides = [1, 1]} : vector<2x128xf32> to vector<2x32xf32>
    %163 = math.tanh %162 : vector<2x32xf32>
    %164 = vector.extract_strided_slice %145 {offsets = [0, 96], sizes = [2, 32], strides = [1, 1]} : vector<2x128xf32> to vector<2x32xf32>
    %cst_70 = arith.constant 5.000000e-01 : f32
    %165 = vector.broadcast %cst_70 : f32 to vector<2x32xf32>
    %166 = arith.mulf %165, %164 : vector<2x32xf32>
    %167 = math.tanh %166 : vector<2x32xf32>
    %cst_71 = arith.constant 5.000000e-01 : f32
    %168 = vector.broadcast %cst_71 : f32 to vector<2x32xf32>
    %169 = arith.mulf %168, %167 : vector<2x32xf32>
    %cst_72 = arith.constant 5.000000e-01 : f32
    %170 = vector.broadcast %cst_72 : f32 to vector<2x32xf32>
    %171 = arith.addf %169, %170 : vector<2x32xf32>
    %172 = arith.mulf %161, %134 : vector<2x32xf32>
    %173 = arith.mulf %153, %163 : vector<2x32xf32>
    %174 = arith.addf %172, %173 : vector<2x32xf32>
    %175 = math.tanh %174 : vector<2x32xf32>
    %176 = arith.mulf %171, %175 : vector<2x32xf32>
    %177 = arith.index_cast %c3_i32 : i32 to index
    %c0_73 = arith.constant 0 : index
    %c0_74 = arith.constant 0 : index
    %178 = vector.load %arg13[%177, %c0_73, %c0_74] : memref<8x2x32xf32, #tpu.memory_space<vmem>>, vector<1x2x32xf32>
    %179 = vector.shape_cast %178 : vector<1x2x32xf32> to vector<2x32xf32>
    %180 = vector.shape_cast %176 : vector<2x32xf32> to vector<1x2x32xf32>
    tpu.vector_store %arg13[%177, %c0_73, %c0_74], %180 {strides = array<i32>} : memref<8x2x32xf32, #tpu.memory_space<vmem>>, vector<1x2x32xf32>,
    %c4_i32 = arith.constant 4 : i32
    %181 = arith.index_cast %c4_i32 : i32 to index
    %c0_75 = arith.constant 0 : index
    %c0_76 = arith.constant 0 : index
    %182 = vector.load %arg12[%181, %c0_75, %c0_76] : memref<8x2x128xf32, #tpu.memory_space<vmem>>, vector<1x2x128xf32>
    %183 = vector.shape_cast %182 : vector<1x2x128xf32> to vector<2x128xf32>
    %cst_77 = arith.constant dense<0.000000e+00> : vector<2x128xf32>
    %184 = tpu.matmul %176, %18, %cst_77 {dimension_numbers = #tpu.dot_dimension_numbers<[1], [0], [0], [1], [0, 0, 1, 1], [], []>} : vector<2x32xf32>, vector<32x128xf32>, vector<2x128xf32> -> vector<2x128xf32>
    %185 = arith.addf %183, %184 : vector<2x128xf32>
    %186 = vector.extract_strided_slice %185 {offsets = [0, 0], sizes = [2, 32], strides = [1, 1]} : vector<2x128xf32> to vector<2x32xf32>
    %cst_78 = arith.constant 5.000000e-01 : f32
    %187 = vector.broadcast %cst_78 : f32 to vector<2x32xf32>
    %188 = arith.mulf %187, %186 : vector<2x32xf32>
    %189 = math.tanh %188 : vector<2x32xf32>
    %cst_79 = arith.constant 5.000000e-01 : f32
    %190 = vector.broadcast %cst_79 : f32 to vector<2x32xf32>
    %191 = arith.mulf %190, %189 : vector<2x32xf32>
    %cst_80 = arith.constant 5.000000e-01 : f32
    %192 = vector.broadcast %cst_80 : f32 to vector<2x32xf32>
    %193 = arith.addf %191, %192 : vector<2x32xf32>
    %194 = vector.extract_strided_slice %185 {offsets = [0, 32], sizes = [2, 32], strides = [1, 1]} : vector<2x128xf32> to vector<2x32xf32>
    %cst_81 = arith.constant 5.000000e-01 : f32
    %195 = vector.broadcast %cst_81 : f32 to vector<2x32xf32>
    %196 = arith.mulf %195, %194 : vector<2x32xf32>
    %197 = math.tanh %196 : vector<2x32xf32>
    %cst_82 = arith.constant 5.000000e-01 : f32
    %198 = vector.broadcast %cst_82 : f32 to vector<2x32xf32>
    %199 = arith.mulf %198, %197 : vector<2x32xf32>
    %cst_83 = arith.constant 5.000000e-01 : f32
    %200 = vector.broadcast %cst_83 : f32 to vector<2x32xf32>
    %201 = arith.addf %199, %200 : vector<2x32xf32>
    %202 = vector.extract_strided_slice %185 {offsets = [0, 64], sizes = [2, 32], strides = [1, 1]} : vector<2x128xf32> to vector<2x32xf32>
    %203 = math.tanh %202 : vector<2x32xf32>
    %204 = vector.extract_strided_slice %185 {offsets = [0, 96], sizes = [2, 32], strides = [1, 1]} : vector<2x128xf32> to vector<2x32xf32>
    %cst_84 = arith.constant 5.000000e-01 : f32
    %205 = vector.broadcast %cst_84 : f32 to vector<2x32xf32>
    %206 = arith.mulf %205, %204 : vector<2x32xf32>
    %207 = math.tanh %206 : vector<2x32xf32>
    %cst_85 = arith.constant 5.000000e-01 : f32
    %208 = vector.broadcast %cst_85 : f32 to vector<2x32xf32>
    %209 = arith.mulf %208, %207 : vector<2x32xf32>
    %cst_86 = arith.constant 5.000000e-01 : f32
    %210 = vector.broadcast %cst_86 : f32 to vector<2x32xf32>
    %211 = arith.addf %209, %210 : vector<2x32xf32>
    %212 = arith.mulf %201, %174 : vector<2x32xf32>
    %213 = arith.mulf %193, %203 : vector<2x32xf32>
    %214 = arith.addf %212, %213 : vector<2x32xf32>
    %215 = math.tanh %214 : vector<2x32xf32>
    %216 = arith.mulf %211, %215 : vector<2x32xf32>
    %217 = arith.index_cast %c4_i32 : i32 to index
    %c0_87 = arith.constant 0 : index
    %c0_88 = arith.constant 0 : index
    %218 = vector.load %arg13[%217, %c0_87, %c0_88] : memref<8x2x32xf32, #tpu.memory_space<vmem>>, vector<1x2x32xf32>
    %219 = vector.shape_cast %218 : vector<1x2x32xf32> to vector<2x32xf32>
    %220 = vector.shape_cast %216 : vector<2x32xf32> to vector<1x2x32xf32>
    tpu.vector_store %arg13[%217, %c0_87, %c0_88], %220 {strides = array<i32>} : memref<8x2x32xf32, #tpu.memory_space<vmem>>, vector<1x2x32xf32>,
    %c5_i32 = arith.constant 5 : i32
    %221 = arith.index_cast %c5_i32 : i32 to index
    %c0_89 = arith.constant 0 : index
    %c0_90 = arith.constant 0 : index
    %222 = vector.load %arg12[%221, %c0_89, %c0_90] : memref<8x2x128xf32, #tpu.memory_space<vmem>>, vector<1x2x128xf32>
    %223 = vector.shape_cast %222 : vector<1x2x128xf32> to vector<2x128xf32>
    %cst_91 = arith.constant dense<0.000000e+00> : vector<2x128xf32>
    %224 = tpu.matmul %216, %18, %cst_91 {dimension_numbers = #tpu.dot_dimension_numbers<[1], [0], [0], [1], [0, 0, 1, 1], [], []>} : vector<2x32xf32>, vector<32x128xf32>, vector<2x128xf32> -> vector<2x128xf32>
    %225 = arith.addf %223, %224 : vector<2x128xf32>
    %226 = vector.extract_strided_slice %225 {offsets = [0, 0], sizes = [2, 32], strides = [1, 1]} : vector<2x128xf32> to vector<2x32xf32>
    %cst_92 = arith.constant 5.000000e-01 : f32
    %227 = vector.broadcast %cst_92 : f32 to vector<2x32xf32>
    %228 = arith.mulf %227, %226 : vector<2x32xf32>
    %229 = math.tanh %228 : vector<2x32xf32>
    %cst_93 = arith.constant 5.000000e-01 : f32
    %230 = vector.broadcast %cst_93 : f32 to vector<2x32xf32>
    %231 = arith.mulf %230, %229 : vector<2x32xf32>
    %cst_94 = arith.constant 5.000000e-01 : f32
    %232 = vector.broadcast %cst_94 : f32 to vector<2x32xf32>
    %233 = arith.addf %231, %232 : vector<2x32xf32>
    %234 = vector.extract_strided_slice %225 {offsets = [0, 32], sizes = [2, 32], strides = [1, 1]} : vector<2x128xf32> to vector<2x32xf32>
    %cst_95 = arith.constant 5.000000e-01 : f32
    %235 = vector.broadcast %cst_95 : f32 to vector<2x32xf32>
    %236 = arith.mulf %235, %234 : vector<2x32xf32>
    %237 = math.tanh %236 : vector<2x32xf32>
    %cst_96 = arith.constant 5.000000e-01 : f32
    %238 = vector.broadcast %cst_96 : f32 to vector<2x32xf32>
    %239 = arith.mulf %238, %237 : vector<2x32xf32>
    %cst_97 = arith.constant 5.000000e-01 : f32
    %240 = vector.broadcast %cst_97 : f32 to vector<2x32xf32>
    %241 = arith.addf %239, %240 : vector<2x32xf32>
    %242 = vector.extract_strided_slice %225 {offsets = [0, 64], sizes = [2, 32], strides = [1, 1]} : vector<2x128xf32> to vector<2x32xf32>
    %243 = math.tanh %242 : vector<2x32xf32>
    %244 = vector.extract_strided_slice %225 {offsets = [0, 96], sizes = [2, 32], strides = [1, 1]} : vector<2x128xf32> to vector<2x32xf32>
    %cst_98 = arith.constant 5.000000e-01 : f32
    %245 = vector.broadcast %cst_98 : f32 to vector<2x32xf32>
    %246 = arith.mulf %245, %244 : vector<2x32xf32>
    %247 = math.tanh %246 : vector<2x32xf32>
    %cst_99 = arith.constant 5.000000e-01 : f32
    %248 = vector.broadcast %cst_99 : f32 to vector<2x32xf32>
    %249 = arith.mulf %248, %247 : vector<2x32xf32>
    %cst_100 = arith.constant 5.000000e-01 : f32
    %250 = vector.broadcast %cst_100 : f32 to vector<2x32xf32>
    %251 = arith.addf %249, %250 : vector<2x32xf32>
    %252 = arith.mulf %241, %214 : vector<2x32xf32>
    %253 = arith.mulf %233, %243 : vector<2x32xf32>
    %254 = arith.addf %252, %253 : vector<2x32xf32>
    %255 = math.tanh %254 : vector<2x32xf32>
    %256 = arith.mulf %251, %255 : vector<2x32xf32>
    %257 = arith.index_cast %c5_i32 : i32 to index
    %c0_101 = arith.constant 0 : index
    %c0_102 = arith.constant 0 : index
    %258 = vector.load %arg13[%257, %c0_101, %c0_102] : memref<8x2x32xf32, #tpu.memory_space<vmem>>, vector<1x2x32xf32>
    %259 = vector.shape_cast %258 : vector<1x2x32xf32> to vector<2x32xf32>
    %260 = vector.shape_cast %256 : vector<2x32xf32> to vector<1x2x32xf32>
    tpu.vector_store %arg13[%257, %c0_101, %c0_102], %260 {strides = array<i32>} : memref<8x2x32xf32, #tpu.memory_space<vmem>>, vector<1x2x32xf32>,
    %c6_i32 = arith.constant 6 : i32
    %261 = arith.index_cast %c6_i32 : i32 to index
    %c0_103 = arith.constant 0 : index
    %c0_104 = arith.constant 0 : index
    %262 = vector.load %arg12[%261, %c0_103, %c0_104] : memref<8x2x128xf32, #tpu.memory_space<vmem>>, vector<1x2x128xf32>
    %263 = vector.shape_cast %262 : vector<1x2x128xf32> to vector<2x128xf32>
    %cst_105 = arith.constant dense<0.000000e+00> : vector<2x128xf32>
    %264 = tpu.matmul %256, %18, %cst_105 {dimension_numbers = #tpu.dot_dimension_numbers<[1], [0], [0], [1], [0, 0, 1, 1], [], []>} : vector<2x32xf32>, vector<32x128xf32>, vector<2x128xf32> -> vector<2x128xf32>
    %265 = arith.addf %263, %264 : vector<2x128xf32>
    %266 = vector.extract_strided_slice %265 {offsets = [0, 0], sizes = [2, 32], strides = [1, 1]} : vector<2x128xf32> to vector<2x32xf32>
    %cst_106 = arith.constant 5.000000e-01 : f32
    %267 = vector.broadcast %cst_106 : f32 to vector<2x32xf32>
    %268 = arith.mulf %267, %266 : vector<2x32xf32>
    %269 = math.tanh %268 : vector<2x32xf32>
    %cst_107 = arith.constant 5.000000e-01 : f32
    %270 = vector.broadcast %cst_107 : f32 to vector<2x32xf32>
    %271 = arith.mulf %270, %269 : vector<2x32xf32>
    %cst_108 = arith.constant 5.000000e-01 : f32
    %272 = vector.broadcast %cst_108 : f32 to vector<2x32xf32>
    %273 = arith.addf %271, %272 : vector<2x32xf32>
    %274 = vector.extract_strided_slice %265 {offsets = [0, 32], sizes = [2, 32], strides = [1, 1]} : vector<2x128xf32> to vector<2x32xf32>
    %cst_109 = arith.constant 5.000000e-01 : f32
    %275 = vector.broadcast %cst_109 : f32 to vector<2x32xf32>
    %276 = arith.mulf %275, %274 : vector<2x32xf32>
    %277 = math.tanh %276 : vector<2x32xf32>
    %cst_110 = arith.constant 5.000000e-01 : f32
    %278 = vector.broadcast %cst_110 : f32 to vector<2x32xf32>
    %279 = arith.mulf %278, %277 : vector<2x32xf32>
    %cst_111 = arith.constant 5.000000e-01 : f32
    %280 = vector.broadcast %cst_111 : f32 to vector<2x32xf32>
    %281 = arith.addf %279, %280 : vector<2x32xf32>
    %282 = vector.extract_strided_slice %265 {offsets = [0, 64], sizes = [2, 32], strides = [1, 1]} : vector<2x128xf32> to vector<2x32xf32>
    %283 = math.tanh %282 : vector<2x32xf32>
    %284 = vector.extract_strided_slice %265 {offsets = [0, 96], sizes = [2, 32], strides = [1, 1]} : vector<2x128xf32> to vector<2x32xf32>
    %cst_112 = arith.constant 5.000000e-01 : f32
    %285 = vector.broadcast %cst_112 : f32 to vector<2x32xf32>
    %286 = arith.mulf %285, %284 : vector<2x32xf32>
    %287 = math.tanh %286 : vector<2x32xf32>
    %cst_113 = arith.constant 5.000000e-01 : f32
    %288 = vector.broadcast %cst_113 : f32 to vector<2x32xf32>
    %289 = arith.mulf %288, %287 : vector<2x32xf32>
    %cst_114 = arith.constant 5.000000e-01 : f32
    %290 = vector.broadcast %cst_114 : f32 to vector<2x32xf32>
    %291 = arith.addf %289, %290 : vector<2x32xf32>
    %292 = arith.mulf %281, %254 : vector<2x32xf32>
    %293 = arith.mulf %273, %283 : vector<2x32xf32>
    %294 = arith.addf %292, %293 : vector<2x32xf32>
    %295 = math.tanh %294 : vector<2x32xf32>
    %296 = arith.mulf %291, %295 : vector<2x32xf32>
    %297 = arith.index_cast %c6_i32 : i32 to index
    %c0_115 = arith.constant 0 : index
    %c0_116 = arith.constant 0 : index
    %298 = vector.load %arg13[%297, %c0_115, %c0_116] : memref<8x2x32xf32, #tpu.memory_space<vmem>>, vector<1x2x32xf32>
    %299 = vector.shape_cast %298 : vector<1x2x32xf32> to vector<2x32xf32>
    %300 = vector.shape_cast %296 : vector<2x32xf32> to vector<1x2x32xf32>
    tpu.vector_store %arg13[%297, %c0_115, %c0_116], %300 {strides = array<i32>} : memref<8x2x32xf32, #tpu.memory_space<vmem>>, vector<1x2x32xf32>,
    %c7_i32 = arith.constant 7 : i32
    %301 = arith.index_cast %c7_i32 : i32 to index
    %c0_117 = arith.constant 0 : index
    %c0_118 = arith.constant 0 : index
    %302 = vector.load %arg12[%301, %c0_117, %c0_118] : memref<8x2x128xf32, #tpu.memory_space<vmem>>, vector<1x2x128xf32>
    %303 = vector.shape_cast %302 : vector<1x2x128xf32> to vector<2x128xf32>
    %cst_119 = arith.constant dense<0.000000e+00> : vector<2x128xf32>
    %304 = tpu.matmul %296, %18, %cst_119 {dimension_numbers = #tpu.dot_dimension_numbers<[1], [0], [0], [1], [0, 0, 1, 1], [], []>} : vector<2x32xf32>, vector<32x128xf32>, vector<2x128xf32> -> vector<2x128xf32>
    %305 = arith.addf %303, %304 : vector<2x128xf32>
    %306 = vector.extract_strided_slice %305 {offsets = [0, 0], sizes = [2, 32], strides = [1, 1]} : vector<2x128xf32> to vector<2x32xf32>
    %cst_120 = arith.constant 5.000000e-01 : f32
    %307 = vector.broadcast %cst_120 : f32 to vector<2x32xf32>
    %308 = arith.mulf %307, %306 : vector<2x32xf32>
    %309 = math.tanh %308 : vector<2x32xf32>
    %cst_121 = arith.constant 5.000000e-01 : f32
    %310 = vector.broadcast %cst_121 : f32 to vector<2x32xf32>
    %311 = arith.mulf %310, %309 : vector<2x32xf32>
    %cst_122 = arith.constant 5.000000e-01 : f32
    %312 = vector.broadcast %cst_122 : f32 to vector<2x32xf32>
    %313 = arith.addf %311, %312 : vector<2x32xf32>
    %314 = vector.extract_strided_slice %305 {offsets = [0, 32], sizes = [2, 32], strides = [1, 1]} : vector<2x128xf32> to vector<2x32xf32>
    %cst_123 = arith.constant 5.000000e-01 : f32
    %315 = vector.broadcast %cst_123 : f32 to vector<2x32xf32>
    %316 = arith.mulf %315, %314 : vector<2x32xf32>
    %317 = math.tanh %316 : vector<2x32xf32>
    %cst_124 = arith.constant 5.000000e-01 : f32
    %318 = vector.broadcast %cst_124 : f32 to vector<2x32xf32>
    %319 = arith.mulf %318, %317 : vector<2x32xf32>
    %cst_125 = arith.constant 5.000000e-01 : f32
    %320 = vector.broadcast %cst_125 : f32 to vector<2x32xf32>
    %321 = arith.addf %319, %320 : vector<2x32xf32>
    %322 = vector.extract_strided_slice %305 {offsets = [0, 64], sizes = [2, 32], strides = [1, 1]} : vector<2x128xf32> to vector<2x32xf32>
    %323 = math.tanh %322 : vector<2x32xf32>
    %324 = vector.extract_strided_slice %305 {offsets = [0, 96], sizes = [2, 32], strides = [1, 1]} : vector<2x128xf32> to vector<2x32xf32>
    %cst_126 = arith.constant 5.000000e-01 : f32
    %325 = vector.broadcast %cst_126 : f32 to vector<2x32xf32>
    %326 = arith.mulf %325, %324 : vector<2x32xf32>
    %327 = math.tanh %326 : vector<2x32xf32>
    %cst_127 = arith.constant 5.000000e-01 : f32
    %328 = vector.broadcast %cst_127 : f32 to vector<2x32xf32>
    %329 = arith.mulf %328, %327 : vector<2x32xf32>
    %cst_128 = arith.constant 5.000000e-01 : f32
    %330 = vector.broadcast %cst_128 : f32 to vector<2x32xf32>
    %331 = arith.addf %329, %330 : vector<2x32xf32>
    %332 = arith.mulf %321, %294 : vector<2x32xf32>
    %333 = arith.mulf %313, %323 : vector<2x32xf32>
    %334 = arith.addf %332, %333 : vector<2x32xf32>
    %335 = math.tanh %334 : vector<2x32xf32>
    %336 = arith.mulf %331, %335 : vector<2x32xf32>
    %337 = arith.index_cast %c7_i32 : i32 to index
    %c0_129 = arith.constant 0 : index
    %c0_130 = arith.constant 0 : index
    %338 = vector.load %arg13[%337, %c0_129, %c0_130] : memref<8x2x32xf32, #tpu.memory_space<vmem>>, vector<1x2x32xf32>
    %339 = vector.shape_cast %338 : vector<1x2x32xf32> to vector<2x32xf32>
    %340 = vector.shape_cast %336 : vector<2x32xf32> to vector<1x2x32xf32>
    tpu.vector_store %arg13[%337, %c0_129, %c0_130], %340 {strides = array<i32>} : memref<8x2x32xf32, #tpu.memory_space<vmem>>, vector<1x2x32xf32>,
    %c8_i32 = arith.constant 8 : i32
    %c0_131 = arith.constant 0 : index
    %c0_132 = arith.constant 0 : index
    %341 = vector.load %arg4[%c0_131, %c0_132] : memref<32x32xf32, #tpu.memory_space<vmem>>, vector<32x32xf32>
    %c0_133 = arith.constant 0 : index
    %c0_134 = arith.constant 0 : index
    %342 = vector.load %arg5[%c0_133, %c0_134] : memref<1x32xf32, #tpu.memory_space<vmem>>, vector<1x32xf32>
    %c0_135 = arith.constant 0 : index
    %c0_136 = arith.constant 0 : index
    %343 = vector.load %arg6[%c0_135, %c0_136] : memref<32x32xf32, #tpu.memory_space<vmem>>, vector<32x32xf32>
    %c0_137 = arith.constant 0 : index
    %c0_138 = arith.constant 0 : index
    %344 = vector.load %arg7[%c0_137, %c0_138] : memref<1x32xf32, #tpu.memory_space<vmem>>, vector<1x32xf32>
    %c0_139 = arith.constant 0 : index
    %c0_140 = arith.constant 0 : index
    %345 = vector.load %arg8[%c0_139, %c0_140] : memref<32x32xf32, #tpu.memory_space<vmem>>, vector<32x32xf32>
    %c0_141 = arith.constant 0 : index
    %c0_142 = arith.constant 0 : index
    %346 = vector.load %arg10[%c0_141, %c0_142] : memref<1x32xf32, #tpu.memory_space<vmem>>, vector<1x32xf32>
    %c0_143 = arith.constant 0 : index
    %c0_144 = arith.constant 0 : index
    %c0_145 = arith.constant 0 : index
    %347 = vector.load %arg13[%c0_143, %c0_144, %c0_145] : memref<8x2x32xf32, #tpu.memory_space<vmem>>, vector<8x1x32xf32>
    %348 = vector.shape_cast %347 : vector<8x1x32xf32> to vector<8x32xf32>
    %cst_146 = arith.constant dense<0.000000e+00> : vector<8x32xf32>
    %349 = tpu.matmul %348, %341, %cst_146 {dimension_numbers = #tpu.dot_dimension_numbers<[1], [0], [0], [1], [0, 0, 1, 1], [], []>} : vector<8x32xf32>, vector<32x32xf32>, vector<8x32xf32> -> vector<8x32xf32>
    %350 = vector.broadcast %342 : vector<1x32xf32> to vector<8x32xf32>
    %351 = arith.addf %349, %350 : vector<8x32xf32>
    %cst_147 = arith.constant 0.000000e+00 : f32
    %352 = vector.broadcast %cst_147 : f32 to vector<8x32xf32>
    %353 = arith.cmpf oge, %351, %352 : vector<8x32xf32>
    %cst_148 = arith.constant 0.00999999977 : f32
    %354 = vector.broadcast %cst_148 : f32 to vector<8x32xf32>
    %355 = arith.mulf %354, %351 : vector<8x32xf32>
    %356 = arith.select %353, %351, %355 : vector<8x32xi1>, vector<8x32xf32>
    %cst_149 = arith.constant dense<0.000000e+00> : vector<8x32xf32>
    %357 = tpu.matmul %356, %343, %cst_149 {dimension_numbers = #tpu.dot_dimension_numbers<[1], [0], [0], [1], [0, 0, 1, 1], [], []>} : vector<8x32xf32>, vector<32x32xf32>, vector<8x32xf32> -> vector<8x32xf32>
    %358 = vector.broadcast %344 : vector<1x32xf32> to vector<8x32xf32>
    %359 = arith.addf %357, %358 : vector<8x32xf32>
    %cst_150 = arith.constant 0.000000e+00 : f32
    %360 = vector.broadcast %cst_150 : f32 to vector<8x32xf32>
    %361 = arith.cmpf oge, %359, %360 : vector<8x32xf32>
    %cst_151 = arith.constant 0.00999999977 : f32
    %362 = vector.broadcast %cst_151 : f32 to vector<8x32xf32>
    %363 = arith.mulf %362, %359 : vector<8x32xf32>
    %364 = arith.select %361, %359, %363 : vector<8x32xi1>, vector<8x32xf32>
    %cst_152 = arith.constant dense<0.000000e+00> : vector<8x32xf32>
    %365 = tpu.matmul %364, %345, %cst_152 {dimension_numbers = #tpu.dot_dimension_numbers<[1], [0], [0], [1], [0, 0, 1, 1], [], []>} : vector<8x32xf32>, vector<32x32xf32>, vector<8x32xf32> -> vector<8x32xf32>
    %366 = vector.broadcast %346 : vector<1x32xf32> to vector<8x32xf32>
    %367 = arith.addf %365, %366 : vector<8x32xf32>
    %c0_153 = arith.constant 0 : index
    %c0_154 = arith.constant 0 : index
    %c0_155 = arith.constant 0 : index
    %368 = vector.load %arg14[%c0_153, %c0_154, %c0_155] : memref<8x2x32xf32, #tpu.memory_space<vmem>>, vector<8x1x32xf32>
    %369 = vector.shape_cast %368 : vector<8x1x32xf32> to vector<8x32xf32>
    %370 = vector.shape_cast %367 : vector<8x32xf32> to vector<8x1x32xf32>
    tpu.vector_store %arg14[%c0_153, %c0_154, %c0_155], %370 {strides = array<i32>} : memref<8x2x32xf32, #tpu.memory_space<vmem>>, vector<8x1x32xf32>,
    %c0_156 = arith.constant 0 : index
    %c1_157 = arith.constant 1 : index
    %c0_158 = arith.constant 0 : index
    %371 = vector.load %arg13[%c0_156, %c1_157, %c0_158] : memref<8x2x32xf32, #tpu.memory_space<vmem>>, vector<8x1x32xf32>
    %372 = vector.shape_cast %371 : vector<8x1x32xf32> to vector<8x32xf32>
    %cst_159 = arith.constant dense<0.000000e+00> : vector<8x32xf32>
    %373 = tpu.matmul %372, %341, %cst_159 {dimension_numbers = #tpu.dot_dimension_numbers<[1], [0], [0], [1], [0, 0, 1, 1], [], []>} : vector<8x32xf32>, vector<32x32xf32>, vector<8x32xf32> -> vector<8x32xf32>
    %374 = vector.broadcast %342 : vector<1x32xf32> to vector<8x32xf32>
    %375 = arith.addf %373, %374 : vector<8x32xf32>
    %cst_160 = arith.constant 0.000000e+00 : f32
    %376 = vector.broadcast %cst_160 : f32 to vector<8x32xf32>
    %377 = arith.cmpf oge, %375, %376 : vector<8x32xf32>
    %cst_161 = arith.constant 0.00999999977 : f32
    %378 = vector.broadcast %cst_161 : f32 to vector<8x32xf32>
    %379 = arith.mulf %378, %375 : vector<8x32xf32>
    %380 = arith.select %377, %375, %379 : vector<8x32xi1>, vector<8x32xf32>
    %cst_162 = arith.constant dense<0.000000e+00> : vector<8x32xf32>
    %381 = tpu.matmul %380, %343, %cst_162 {dimension_numbers = #tpu.dot_dimension_numbers<[1], [0], [0], [1], [0, 0, 1, 1], [], []>} : vector<8x32xf32>, vector<32x32xf32>, vector<8x32xf32> -> vector<8x32xf32>
    %382 = vector.broadcast %344 : vector<1x32xf32> to vector<8x32xf32>
    %383 = arith.addf %381, %382 : vector<8x32xf32>
    %cst_163 = arith.constant 0.000000e+00 : f32
    %384 = vector.broadcast %cst_163 : f32 to vector<8x32xf32>
    %385 = arith.cmpf oge, %383, %384 : vector<8x32xf32>
    %cst_164 = arith.constant 0.00999999977 : f32
    %386 = vector.broadcast %cst_164 : f32 to vector<8x32xf32>
    %387 = arith.mulf %386, %383 : vector<8x32xf32>
    %388 = arith.select %385, %383, %387 : vector<8x32xi1>, vector<8x32xf32>
    %cst_165 = arith.constant dense<0.000000e+00> : vector<8x32xf32>
    %389 = tpu.matmul %388, %345, %cst_165 {dimension_numbers = #tpu.dot_dimension_numbers<[1], [0], [0], [1], [0, 0, 1, 1], [], []>} : vector<8x32xf32>, vector<32x32xf32>, vector<8x32xf32> -> vector<8x32xf32>
    %390 = vector.broadcast %346 : vector<1x32xf32> to vector<8x32xf32>
    %391 = arith.addf %389, %390 : vector<8x32xf32>
    %c0_166 = arith.constant 0 : index
    %c1_167 = arith.constant 1 : index
    %c0_168 = arith.constant 0 : index
    %392 = vector.load %arg14[%c0_166, %c1_167, %c0_168] : memref<8x2x32xf32, #tpu.memory_space<vmem>>, vector<8x1x32xf32>
    %393 = vector.shape_cast %392 : vector<8x1x32xf32> to vector<8x32xf32>
    %394 = vector.shape_cast %391 : vector<8x32xf32> to vector<8x1x32xf32>
    tpu.vector_store %arg14[%c0_166, %c1_167, %c0_168], %394 {strides = array<i32>} : memref<8x2x32xf32, #tpu.memory_space<vmem>>, vector<8x1x32xf32>,
    %c0_169 = arith.constant 0 : index
    %c0_170 = arith.constant 0 : index
    %395 = vector.load %arg9[%c0_169, %c0_170] : memref<8x32xf32, #tpu.memory_space<vmem>>, vector<8x32xf32>
    %cst_171 = arith.constant 0.000000e+00 : f32
    %396 = vector.broadcast %cst_171 : f32 to vector<2x8xf32>
    %cst_172 = arith.constant 0.000000e+00 : f32
    %397 = vector.broadcast %cst_172 : f32 to vector<2x8xf32>
    %c0_i32_173 = arith.constant 0 : i32
    %398 = arith.index_cast %c0_i32_173 : i32 to index
    %c0_174 = arith.constant 0 : index
    %c0_175 = arith.constant 0 : index
    %399 = vector.load %arg14[%398, %c0_174, %c0_175] : memref<8x2x32xf32, #tpu.memory_space<vmem>>, vector<1x2x32xf32>
    %400 = vector.shape_cast %399 : vector<1x2x32xf32> to vector<2x32xf32>
    %cst_176 = arith.constant dense<0.000000e+00> : vector<2x32xf32>
    %401 = tpu.matmul %396, %395, %cst_176 {dimension_numbers = #tpu.dot_dimension_numbers<[1], [0], [0], [1], [0, 0, 1, 1], [], []>} : vector<2x8xf32>, vector<8x32xf32>, vector<2x32xf32> -> vector<2x32xf32>
    %402 = arith.addf %400, %401 : vector<2x32xf32>
    %403 = vector.extract_strided_slice %402 {offsets = [0, 0], sizes = [2, 8], strides = [1, 1]} : vector<2x32xf32> to vector<2x8xf32>
    %cst_177 = arith.constant 5.000000e-01 : f32
    %404 = vector.broadcast %cst_177 : f32 to vector<2x8xf32>
    %405 = arith.mulf %404, %403 : vector<2x8xf32>
    %406 = math.tanh %405 : vector<2x8xf32>
    %cst_178 = arith.constant 5.000000e-01 : f32
    %407 = vector.broadcast %cst_178 : f32 to vector<2x8xf32>
    %408 = arith.mulf %407, %406 : vector<2x8xf32>
    %cst_179 = arith.constant 5.000000e-01 : f32
    %409 = vector.broadcast %cst_179 : f32 to vector<2x8xf32>
    %410 = arith.addf %408, %409 : vector<2x8xf32>
    %411 = vector.extract_strided_slice %402 {offsets = [0, 8], sizes = [2, 8], strides = [1, 1]} : vector<2x32xf32> to vector<2x8xf32>
    %cst_180 = arith.constant 5.000000e-01 : f32
    %412 = vector.broadcast %cst_180 : f32 to vector<2x8xf32>
    %413 = arith.mulf %412, %411 : vector<2x8xf32>
    %414 = math.tanh %413 : vector<2x8xf32>
    %cst_181 = arith.constant 5.000000e-01 : f32
    %415 = vector.broadcast %cst_181 : f32 to vector<2x8xf32>
    %416 = arith.mulf %415, %414 : vector<2x8xf32>
    %cst_182 = arith.constant 5.000000e-01 : f32
    %417 = vector.broadcast %cst_182 : f32 to vector<2x8xf32>
    %418 = arith.addf %416, %417 : vector<2x8xf32>
    %419 = vector.extract_strided_slice %402 {offsets = [0, 16], sizes = [2, 8], strides = [1, 1]} : vector<2x32xf32> to vector<2x8xf32>
    %420 = math.tanh %419 : vector<2x8xf32>
    %421 = vector.extract_strided_slice %402 {offsets = [0, 24], sizes = [2, 8], strides = [1, 1]} : vector<2x32xf32> to vector<2x8xf32>
    %cst_183 = arith.constant 5.000000e-01 : f32
    %422 = vector.broadcast %cst_183 : f32 to vector<2x8xf32>
    %423 = arith.mulf %422, %421 : vector<2x8xf32>
    %424 = math.tanh %423 : vector<2x8xf32>
    %cst_184 = arith.constant 5.000000e-01 : f32
    %425 = vector.broadcast %cst_184 : f32 to vector<2x8xf32>
    %426 = arith.mulf %425, %424 : vector<2x8xf32>
    %cst_185 = arith.constant 5.000000e-01 : f32
    %427 = vector.broadcast %cst_185 : f32 to vector<2x8xf32>
    %428 = arith.addf %426, %427 : vector<2x8xf32>
    %429 = arith.mulf %418, %397 : vector<2x8xf32>
    %430 = arith.mulf %410, %420 : vector<2x8xf32>
    %431 = arith.addf %429, %430 : vector<2x8xf32>
    %432 = math.tanh %431 : vector<2x8xf32>
    %433 = arith.mulf %428, %432 : vector<2x8xf32>
    %434 = arith.index_cast %c0_i32_173 : i32 to index
    %c0_186 = arith.constant 0 : index
    %c0_187 = arith.constant 0 : index
    %435 = vector.load %arg15[%434, %c0_186, %c0_187] : memref<8x2x8xf32, #tpu.memory_space<vmem>>, vector<1x2x8xf32>
    %436 = vector.shape_cast %435 : vector<1x2x8xf32> to vector<2x8xf32>
    %437 = vector.shape_cast %433 : vector<2x8xf32> to vector<1x2x8xf32>
    tpu.vector_store %arg15[%434, %c0_186, %c0_187], %437 {strides = array<i32>} : memref<8x2x8xf32, #tpu.memory_space<vmem>>, vector<1x2x8xf32>,
    %c1_i32_188 = arith.constant 1 : i32
    %438 = arith.index_cast %c1_i32_188 : i32 to index
    %c0_189 = arith.constant 0 : index
    %c0_190 = arith.constant 0 : index
    %439 = vector.load %arg14[%438, %c0_189, %c0_190] : memref<8x2x32xf32, #tpu.memory_space<vmem>>, vector<1x2x32xf32>
    %440 = vector.shape_cast %439 : vector<1x2x32xf32> to vector<2x32xf32>
    %cst_191 = arith.constant dense<0.000000e+00> : vector<2x32xf32>
    %441 = tpu.matmul %433, %395, %cst_191 {dimension_numbers = #tpu.dot_dimension_numbers<[1], [0], [0], [1], [0, 0, 1, 1], [], []>} : vector<2x8xf32>, vector<8x32xf32>, vector<2x32xf32> -> vector<2x32xf32>
    %442 = arith.addf %440, %441 : vector<2x32xf32>
    %443 = vector.extract_strided_slice %442 {offsets = [0, 0], sizes = [2, 8], strides = [1, 1]} : vector<2x32xf32> to vector<2x8xf32>
    %cst_192 = arith.constant 5.000000e-01 : f32
    %444 = vector.broadcast %cst_192 : f32 to vector<2x8xf32>
    %445 = arith.mulf %444, %443 : vector<2x8xf32>
    %446 = math.tanh %445 : vector<2x8xf32>
    %cst_193 = arith.constant 5.000000e-01 : f32
    %447 = vector.broadcast %cst_193 : f32 to vector<2x8xf32>
    %448 = arith.mulf %447, %446 : vector<2x8xf32>
    %cst_194 = arith.constant 5.000000e-01 : f32
    %449 = vector.broadcast %cst_194 : f32 to vector<2x8xf32>
    %450 = arith.addf %448, %449 : vector<2x8xf32>
    %451 = vector.extract_strided_slice %442 {offsets = [0, 8], sizes = [2, 8], strides = [1, 1]} : vector<2x32xf32> to vector<2x8xf32>
    %cst_195 = arith.constant 5.000000e-01 : f32
    %452 = vector.broadcast %cst_195 : f32 to vector<2x8xf32>
    %453 = arith.mulf %452, %451 : vector<2x8xf32>
    %454 = math.tanh %453 : vector<2x8xf32>
    %cst_196 = arith.constant 5.000000e-01 : f32
    %455 = vector.broadcast %cst_196 : f32 to vector<2x8xf32>
    %456 = arith.mulf %455, %454 : vector<2x8xf32>
    %cst_197 = arith.constant 5.000000e-01 : f32
    %457 = vector.broadcast %cst_197 : f32 to vector<2x8xf32>
    %458 = arith.addf %456, %457 : vector<2x8xf32>
    %459 = vector.extract_strided_slice %442 {offsets = [0, 16], sizes = [2, 8], strides = [1, 1]} : vector<2x32xf32> to vector<2x8xf32>
    %460 = math.tanh %459 : vector<2x8xf32>
    %461 = vector.extract_strided_slice %442 {offsets = [0, 24], sizes = [2, 8], strides = [1, 1]} : vector<2x32xf32> to vector<2x8xf32>
    %cst_198 = arith.constant 5.000000e-01 : f32
    %462 = vector.broadcast %cst_198 : f32 to vector<2x8xf32>
    %463 = arith.mulf %462, %461 : vector<2x8xf32>
    %464 = math.tanh %463 : vector<2x8xf32>
    %cst_199 = arith.constant 5.000000e-01 : f32
    %465 = vector.broadcast %cst_199 : f32 to vector<2x8xf32>
    %466 = arith.mulf %465, %464 : vector<2x8xf32>
    %cst_200 = arith.constant 5.000000e-01 : f32
    %467 = vector.broadcast %cst_200 : f32 to vector<2x8xf32>
    %468 = arith.addf %466, %467 : vector<2x8xf32>
    %469 = arith.mulf %458, %431 : vector<2x8xf32>
    %470 = arith.mulf %450, %460 : vector<2x8xf32>
    %471 = arith.addf %469, %470 : vector<2x8xf32>
    %472 = math.tanh %471 : vector<2x8xf32>
    %473 = arith.mulf %468, %472 : vector<2x8xf32>
    %474 = arith.index_cast %c1_i32_188 : i32 to index
    %c0_201 = arith.constant 0 : index
    %c0_202 = arith.constant 0 : index
    %475 = vector.load %arg15[%474, %c0_201, %c0_202] : memref<8x2x8xf32, #tpu.memory_space<vmem>>, vector<1x2x8xf32>
    %476 = vector.shape_cast %475 : vector<1x2x8xf32> to vector<2x8xf32>
    %477 = vector.shape_cast %473 : vector<2x8xf32> to vector<1x2x8xf32>
    tpu.vector_store %arg15[%474, %c0_201, %c0_202], %477 {strides = array<i32>} : memref<8x2x8xf32, #tpu.memory_space<vmem>>, vector<1x2x8xf32>,
    %c2_i32_203 = arith.constant 2 : i32
    %478 = arith.index_cast %c2_i32_203 : i32 to index
    %c0_204 = arith.constant 0 : index
    %c0_205 = arith.constant 0 : index
    %479 = vector.load %arg14[%478, %c0_204, %c0_205] : memref<8x2x32xf32, #tpu.memory_space<vmem>>, vector<1x2x32xf32>
    %480 = vector.shape_cast %479 : vector<1x2x32xf32> to vector<2x32xf32>
    %cst_206 = arith.constant dense<0.000000e+00> : vector<2x32xf32>
    %481 = tpu.matmul %473, %395, %cst_206 {dimension_numbers = #tpu.dot_dimension_numbers<[1], [0], [0], [1], [0, 0, 1, 1], [], []>} : vector<2x8xf32>, vector<8x32xf32>, vector<2x32xf32> -> vector<2x32xf32>
    %482 = arith.addf %480, %481 : vector<2x32xf32>
    %483 = vector.extract_strided_slice %482 {offsets = [0, 0], sizes = [2, 8], strides = [1, 1]} : vector<2x32xf32> to vector<2x8xf32>
    %cst_207 = arith.constant 5.000000e-01 : f32
    %484 = vector.broadcast %cst_207 : f32 to vector<2x8xf32>
    %485 = arith.mulf %484, %483 : vector<2x8xf32>
    %486 = math.tanh %485 : vector<2x8xf32>
    %cst_208 = arith.constant 5.000000e-01 : f32
    %487 = vector.broadcast %cst_208 : f32 to vector<2x8xf32>
    %488 = arith.mulf %487, %486 : vector<2x8xf32>
    %cst_209 = arith.constant 5.000000e-01 : f32
    %489 = vector.broadcast %cst_209 : f32 to vector<2x8xf32>
    %490 = arith.addf %488, %489 : vector<2x8xf32>
    %491 = vector.extract_strided_slice %482 {offsets = [0, 8], sizes = [2, 8], strides = [1, 1]} : vector<2x32xf32> to vector<2x8xf32>
    %cst_210 = arith.constant 5.000000e-01 : f32
    %492 = vector.broadcast %cst_210 : f32 to vector<2x8xf32>
    %493 = arith.mulf %492, %491 : vector<2x8xf32>
    %494 = math.tanh %493 : vector<2x8xf32>
    %cst_211 = arith.constant 5.000000e-01 : f32
    %495 = vector.broadcast %cst_211 : f32 to vector<2x8xf32>
    %496 = arith.mulf %495, %494 : vector<2x8xf32>
    %cst_212 = arith.constant 5.000000e-01 : f32
    %497 = vector.broadcast %cst_212 : f32 to vector<2x8xf32>
    %498 = arith.addf %496, %497 : vector<2x8xf32>
    %499 = vector.extract_strided_slice %482 {offsets = [0, 16], sizes = [2, 8], strides = [1, 1]} : vector<2x32xf32> to vector<2x8xf32>
    %500 = math.tanh %499 : vector<2x8xf32>
    %501 = vector.extract_strided_slice %482 {offsets = [0, 24], sizes = [2, 8], strides = [1, 1]} : vector<2x32xf32> to vector<2x8xf32>
    %cst_213 = arith.constant 5.000000e-01 : f32
    %502 = vector.broadcast %cst_213 : f32 to vector<2x8xf32>
    %503 = arith.mulf %502, %501 : vector<2x8xf32>
    %504 = math.tanh %503 : vector<2x8xf32>
    %cst_214 = arith.constant 5.000000e-01 : f32
    %505 = vector.broadcast %cst_214 : f32 to vector<2x8xf32>
    %506 = arith.mulf %505, %504 : vector<2x8xf32>
    %cst_215 = arith.constant 5.000000e-01 : f32
    %507 = vector.broadcast %cst_215 : f32 to vector<2x8xf32>
    %508 = arith.addf %506, %507 : vector<2x8xf32>
    %509 = arith.mulf %498, %471 : vector<2x8xf32>
    %510 = arith.mulf %490, %500 : vector<2x8xf32>
    %511 = arith.addf %509, %510 : vector<2x8xf32>
    %512 = math.tanh %511 : vector<2x8xf32>
    %513 = arith.mulf %508, %512 : vector<2x8xf32>
    %514 = arith.index_cast %c2_i32_203 : i32 to index
    %c0_216 = arith.constant 0 : index
    %c0_217 = arith.constant 0 : index
    %515 = vector.load %arg15[%514, %c0_216, %c0_217] : memref<8x2x8xf32, #tpu.memory_space<vmem>>, vector<1x2x8xf32>
    %516 = vector.shape_cast %515 : vector<1x2x8xf32> to vector<2x8xf32>
    %517 = vector.shape_cast %513 : vector<2x8xf32> to vector<1x2x8xf32>
    tpu.vector_store %arg15[%514, %c0_216, %c0_217], %517 {strides = array<i32>} : memref<8x2x8xf32, #tpu.memory_space<vmem>>, vector<1x2x8xf32>,
    %c3_i32_218 = arith.constant 3 : i32
    %518 = arith.index_cast %c3_i32_218 : i32 to index
    %c0_219 = arith.constant 0 : index
    %c0_220 = arith.constant 0 : index
    %519 = vector.load %arg14[%518, %c0_219, %c0_220] : memref<8x2x32xf32, #tpu.memory_space<vmem>>, vector<1x2x32xf32>
    %520 = vector.shape_cast %519 : vector<1x2x32xf32> to vector<2x32xf32>
    %cst_221 = arith.constant dense<0.000000e+00> : vector<2x32xf32>
    %521 = tpu.matmul %513, %395, %cst_221 {dimension_numbers = #tpu.dot_dimension_numbers<[1], [0], [0], [1], [0, 0, 1, 1], [], []>} : vector<2x8xf32>, vector<8x32xf32>, vector<2x32xf32> -> vector<2x32xf32>
    %522 = arith.addf %520, %521 : vector<2x32xf32>
    %523 = vector.extract_strided_slice %522 {offsets = [0, 0], sizes = [2, 8], strides = [1, 1]} : vector<2x32xf32> to vector<2x8xf32>
    %cst_222 = arith.constant 5.000000e-01 : f32
    %524 = vector.broadcast %cst_222 : f32 to vector<2x8xf32>
    %525 = arith.mulf %524, %523 : vector<2x8xf32>
    %526 = math.tanh %525 : vector<2x8xf32>
    %cst_223 = arith.constant 5.000000e-01 : f32
    %527 = vector.broadcast %cst_223 : f32 to vector<2x8xf32>
    %528 = arith.mulf %527, %526 : vector<2x8xf32>
    %cst_224 = arith.constant 5.000000e-01 : f32
    %529 = vector.broadcast %cst_224 : f32 to vector<2x8xf32>
    %530 = arith.addf %528, %529 : vector<2x8xf32>
    %531 = vector.extract_strided_slice %522 {offsets = [0, 8], sizes = [2, 8], strides = [1, 1]} : vector<2x32xf32> to vector<2x8xf32>
    %cst_225 = arith.constant 5.000000e-01 : f32
    %532 = vector.broadcast %cst_225 : f32 to vector<2x8xf32>
    %533 = arith.mulf %532, %531 : vector<2x8xf32>
    %534 = math.tanh %533 : vector<2x8xf32>
    %cst_226 = arith.constant 5.000000e-01 : f32
    %535 = vector.broadcast %cst_226 : f32 to vector<2x8xf32>
    %536 = arith.mulf %535, %534 : vector<2x8xf32>
    %cst_227 = arith.constant 5.000000e-01 : f32
    %537 = vector.broadcast %cst_227 : f32 to vector<2x8xf32>
    %538 = arith.addf %536, %537 : vector<2x8xf32>
    %539 = vector.extract_strided_slice %522 {offsets = [0, 16], sizes = [2, 8], strides = [1, 1]} : vector<2x32xf32> to vector<2x8xf32>
    %540 = math.tanh %539 : vector<2x8xf32>
    %541 = vector.extract_strided_slice %522 {offsets = [0, 24], sizes = [2, 8], strides = [1, 1]} : vector<2x32xf32> to vector<2x8xf32>
    %cst_228 = arith.constant 5.000000e-01 : f32
    %542 = vector.broadcast %cst_228 : f32 to vector<2x8xf32>
    %543 = arith.mulf %542, %541 : vector<2x8xf32>
    %544 = math.tanh %543 : vector<2x8xf32>
    %cst_229 = arith.constant 5.000000e-01 : f32
    %545 = vector.broadcast %cst_229 : f32 to vector<2x8xf32>
    %546 = arith.mulf %545, %544 : vector<2x8xf32>
    %cst_230 = arith.constant 5.000000e-01 : f32
    %547 = vector.broadcast %cst_230 : f32 to vector<2x8xf32>
    %548 = arith.addf %546, %547 : vector<2x8xf32>
    %549 = arith.mulf %538, %511 : vector<2x8xf32>
    %550 = arith.mulf %530, %540 : vector<2x8xf32>
    %551 = arith.addf %549, %550 : vector<2x8xf32>
    %552 = math.tanh %551 : vector<2x8xf32>
    %553 = arith.mulf %548, %552 : vector<2x8xf32>
    %554 = arith.index_cast %c3_i32_218 : i32 to index
    %c0_231 = arith.constant 0 : index
    %c0_232 = arith.constant 0 : index
    %555 = vector.load %arg15[%554, %c0_231, %c0_232] : memref<8x2x8xf32, #tpu.memory_space<vmem>>, vector<1x2x8xf32>
    %556 = vector.shape_cast %555 : vector<1x2x8xf32> to vector<2x8xf32>
    %557 = vector.shape_cast %553 : vector<2x8xf32> to vector<1x2x8xf32>
    tpu.vector_store %arg15[%554, %c0_231, %c0_232], %557 {strides = array<i32>} : memref<8x2x8xf32, #tpu.memory_space<vmem>>, vector<1x2x8xf32>,
    %c4_i32_233 = arith.constant 4 : i32
    %558 = arith.index_cast %c4_i32_233 : i32 to index
    %c0_234 = arith.constant 0 : index
    %c0_235 = arith.constant 0 : index
    %559 = vector.load %arg14[%558, %c0_234, %c0_235] : memref<8x2x32xf32, #tpu.memory_space<vmem>>, vector<1x2x32xf32>
    %560 = vector.shape_cast %559 : vector<1x2x32xf32> to vector<2x32xf32>
    %cst_236 = arith.constant dense<0.000000e+00> : vector<2x32xf32>
    %561 = tpu.matmul %553, %395, %cst_236 {dimension_numbers = #tpu.dot_dimension_numbers<[1], [0], [0], [1], [0, 0, 1, 1], [], []>} : vector<2x8xf32>, vector<8x32xf32>, vector<2x32xf32> -> vector<2x32xf32>
    %562 = arith.addf %560, %561 : vector<2x32xf32>
    %563 = vector.extract_strided_slice %562 {offsets = [0, 0], sizes = [2, 8], strides = [1, 1]} : vector<2x32xf32> to vector<2x8xf32>
    %cst_237 = arith.constant 5.000000e-01 : f32
    %564 = vector.broadcast %cst_237 : f32 to vector<2x8xf32>
    %565 = arith.mulf %564, %563 : vector<2x8xf32>
    %566 = math.tanh %565 : vector<2x8xf32>
    %cst_238 = arith.constant 5.000000e-01 : f32
    %567 = vector.broadcast %cst_238 : f32 to vector<2x8xf32>
    %568 = arith.mulf %567, %566 : vector<2x8xf32>
    %cst_239 = arith.constant 5.000000e-01 : f32
    %569 = vector.broadcast %cst_239 : f32 to vector<2x8xf32>
    %570 = arith.addf %568, %569 : vector<2x8xf32>
    %571 = vector.extract_strided_slice %562 {offsets = [0, 8], sizes = [2, 8], strides = [1, 1]} : vector<2x32xf32> to vector<2x8xf32>
    %cst_240 = arith.constant 5.000000e-01 : f32
    %572 = vector.broadcast %cst_240 : f32 to vector<2x8xf32>
    %573 = arith.mulf %572, %571 : vector<2x8xf32>
    %574 = math.tanh %573 : vector<2x8xf32>
    %cst_241 = arith.constant 5.000000e-01 : f32
    %575 = vector.broadcast %cst_241 : f32 to vector<2x8xf32>
    %576 = arith.mulf %575, %574 : vector<2x8xf32>
    %cst_242 = arith.constant 5.000000e-01 : f32
    %577 = vector.broadcast %cst_242 : f32 to vector<2x8xf32>
    %578 = arith.addf %576, %577 : vector<2x8xf32>
    %579 = vector.extract_strided_slice %562 {offsets = [0, 16], sizes = [2, 8], strides = [1, 1]} : vector<2x32xf32> to vector<2x8xf32>
    %580 = math.tanh %579 : vector<2x8xf32>
    %581 = vector.extract_strided_slice %562 {offsets = [0, 24], sizes = [2, 8], strides = [1, 1]} : vector<2x32xf32> to vector<2x8xf32>
    %cst_243 = arith.constant 5.000000e-01 : f32
    %582 = vector.broadcast %cst_243 : f32 to vector<2x8xf32>
    %583 = arith.mulf %582, %581 : vector<2x8xf32>
    %584 = math.tanh %583 : vector<2x8xf32>
    %cst_244 = arith.constant 5.000000e-01 : f32
    %585 = vector.broadcast %cst_244 : f32 to vector<2x8xf32>
    %586 = arith.mulf %585, %584 : vector<2x8xf32>
    %cst_245 = arith.constant 5.000000e-01 : f32
    %587 = vector.broadcast %cst_245 : f32 to vector<2x8xf32>
    %588 = arith.addf %586, %587 : vector<2x8xf32>
    %589 = arith.mulf %578, %551 : vector<2x8xf32>
    %590 = arith.mulf %570, %580 : vector<2x8xf32>
    %591 = arith.addf %589, %590 : vector<2x8xf32>
    %592 = math.tanh %591 : vector<2x8xf32>
    %593 = arith.mulf %588, %592 : vector<2x8xf32>
    %594 = arith.index_cast %c4_i32_233 : i32 to index
    %c0_246 = arith.constant 0 : index
    %c0_247 = arith.constant 0 : index
    %595 = vector.load %arg15[%594, %c0_246, %c0_247] : memref<8x2x8xf32, #tpu.memory_space<vmem>>, vector<1x2x8xf32>
    %596 = vector.shape_cast %595 : vector<1x2x8xf32> to vector<2x8xf32>
    %597 = vector.shape_cast %593 : vector<2x8xf32> to vector<1x2x8xf32>
    tpu.vector_store %arg15[%594, %c0_246, %c0_247], %597 {strides = array<i32>} : memref<8x2x8xf32, #tpu.memory_space<vmem>>, vector<1x2x8xf32>,
    %c5_i32_248 = arith.constant 5 : i32
    %598 = arith.index_cast %c5_i32_248 : i32 to index
    %c0_249 = arith.constant 0 : index
    %c0_250 = arith.constant 0 : index
    %599 = vector.load %arg14[%598, %c0_249, %c0_250] : memref<8x2x32xf32, #tpu.memory_space<vmem>>, vector<1x2x32xf32>
    %600 = vector.shape_cast %599 : vector<1x2x32xf32> to vector<2x32xf32>
    %cst_251 = arith.constant dense<0.000000e+00> : vector<2x32xf32>
    %601 = tpu.matmul %593, %395, %cst_251 {dimension_numbers = #tpu.dot_dimension_numbers<[1], [0], [0], [1], [0, 0, 1, 1], [], []>} : vector<2x8xf32>, vector<8x32xf32>, vector<2x32xf32> -> vector<2x32xf32>
    %602 = arith.addf %600, %601 : vector<2x32xf32>
    %603 = vector.extract_strided_slice %602 {offsets = [0, 0], sizes = [2, 8], strides = [1, 1]} : vector<2x32xf32> to vector<2x8xf32>
    %cst_252 = arith.constant 5.000000e-01 : f32
    %604 = vector.broadcast %cst_252 : f32 to vector<2x8xf32>
    %605 = arith.mulf %604, %603 : vector<2x8xf32>
    %606 = math.tanh %605 : vector<2x8xf32>
    %cst_253 = arith.constant 5.000000e-01 : f32
    %607 = vector.broadcast %cst_253 : f32 to vector<2x8xf32>
    %608 = arith.mulf %607, %606 : vector<2x8xf32>
    %cst_254 = arith.constant 5.000000e-01 : f32
    %609 = vector.broadcast %cst_254 : f32 to vector<2x8xf32>
    %610 = arith.addf %608, %609 : vector<2x8xf32>
    %611 = vector.extract_strided_slice %602 {offsets = [0, 8], sizes = [2, 8], strides = [1, 1]} : vector<2x32xf32> to vector<2x8xf32>
    %cst_255 = arith.constant 5.000000e-01 : f32
    %612 = vector.broadcast %cst_255 : f32 to vector<2x8xf32>
    %613 = arith.mulf %612, %611 : vector<2x8xf32>
    %614 = math.tanh %613 : vector<2x8xf32>
    %cst_256 = arith.constant 5.000000e-01 : f32
    %615 = vector.broadcast %cst_256 : f32 to vector<2x8xf32>
    %616 = arith.mulf %615, %614 : vector<2x8xf32>
    %cst_257 = arith.constant 5.000000e-01 : f32
    %617 = vector.broadcast %cst_257 : f32 to vector<2x8xf32>
    %618 = arith.addf %616, %617 : vector<2x8xf32>
    %619 = vector.extract_strided_slice %602 {offsets = [0, 16], sizes = [2, 8], strides = [1, 1]} : vector<2x32xf32> to vector<2x8xf32>
    %620 = math.tanh %619 : vector<2x8xf32>
    %621 = vector.extract_strided_slice %602 {offsets = [0, 24], sizes = [2, 8], strides = [1, 1]} : vector<2x32xf32> to vector<2x8xf32>
    %cst_258 = arith.constant 5.000000e-01 : f32
    %622 = vector.broadcast %cst_258 : f32 to vector<2x8xf32>
    %623 = arith.mulf %622, %621 : vector<2x8xf32>
    %624 = math.tanh %623 : vector<2x8xf32>
    %cst_259 = arith.constant 5.000000e-01 : f32
    %625 = vector.broadcast %cst_259 : f32 to vector<2x8xf32>
    %626 = arith.mulf %625, %624 : vector<2x8xf32>
    %cst_260 = arith.constant 5.000000e-01 : f32
    %627 = vector.broadcast %cst_260 : f32 to vector<2x8xf32>
    %628 = arith.addf %626, %627 : vector<2x8xf32>
    %629 = arith.mulf %618, %591 : vector<2x8xf32>
    %630 = arith.mulf %610, %620 : vector<2x8xf32>
    %631 = arith.addf %629, %630 : vector<2x8xf32>
    %632 = math.tanh %631 : vector<2x8xf32>
    %633 = arith.mulf %628, %632 : vector<2x8xf32>
    %634 = arith.index_cast %c5_i32_248 : i32 to index
    %c0_261 = arith.constant 0 : index
    %c0_262 = arith.constant 0 : index
    %635 = vector.load %arg15[%634, %c0_261, %c0_262] : memref<8x2x8xf32, #tpu.memory_space<vmem>>, vector<1x2x8xf32>
    %636 = vector.shape_cast %635 : vector<1x2x8xf32> to vector<2x8xf32>
    %637 = vector.shape_cast %633 : vector<2x8xf32> to vector<1x2x8xf32>
    tpu.vector_store %arg15[%634, %c0_261, %c0_262], %637 {strides = array<i32>} : memref<8x2x8xf32, #tpu.memory_space<vmem>>, vector<1x2x8xf32>,
    %c6_i32_263 = arith.constant 6 : i32
    %638 = arith.index_cast %c6_i32_263 : i32 to index
    %c0_264 = arith.constant 0 : index
    %c0_265 = arith.constant 0 : index
    %639 = vector.load %arg14[%638, %c0_264, %c0_265] : memref<8x2x32xf32, #tpu.memory_space<vmem>>, vector<1x2x32xf32>
    %640 = vector.shape_cast %639 : vector<1x2x32xf32> to vector<2x32xf32>
    %cst_266 = arith.constant dense<0.000000e+00> : vector<2x32xf32>
    %641 = tpu.matmul %633, %395, %cst_266 {dimension_numbers = #tpu.dot_dimension_numbers<[1], [0], [0], [1], [0, 0, 1, 1], [], []>} : vector<2x8xf32>, vector<8x32xf32>, vector<2x32xf32> -> vector<2x32xf32>
    %642 = arith.addf %640, %641 : vector<2x32xf32>
    %643 = vector.extract_strided_slice %642 {offsets = [0, 0], sizes = [2, 8], strides = [1, 1]} : vector<2x32xf32> to vector<2x8xf32>
    %cst_267 = arith.constant 5.000000e-01 : f32
    %644 = vector.broadcast %cst_267 : f32 to vector<2x8xf32>
    %645 = arith.mulf %644, %643 : vector<2x8xf32>
    %646 = math.tanh %645 : vector<2x8xf32>
    %cst_268 = arith.constant 5.000000e-01 : f32
    %647 = vector.broadcast %cst_268 : f32 to vector<2x8xf32>
    %648 = arith.mulf %647, %646 : vector<2x8xf32>
    %cst_269 = arith.constant 5.000000e-01 : f32
    %649 = vector.broadcast %cst_269 : f32 to vector<2x8xf32>
    %650 = arith.addf %648, %649 : vector<2x8xf32>
    %651 = vector.extract_strided_slice %642 {offsets = [0, 8], sizes = [2, 8], strides = [1, 1]} : vector<2x32xf32> to vector<2x8xf32>
    %cst_270 = arith.constant 5.000000e-01 : f32
    %652 = vector.broadcast %cst_270 : f32 to vector<2x8xf32>
    %653 = arith.mulf %652, %651 : vector<2x8xf32>
    %654 = math.tanh %653 : vector<2x8xf32>
    %cst_271 = arith.constant 5.000000e-01 : f32
    %655 = vector.broadcast %cst_271 : f32 to vector<2x8xf32>
    %656 = arith.mulf %655, %654 : vector<2x8xf32>
    %cst_272 = arith.constant 5.000000e-01 : f32
    %657 = vector.broadcast %cst_272 : f32 to vector<2x8xf32>
    %658 = arith.addf %656, %657 : vector<2x8xf32>
    %659 = vector.extract_strided_slice %642 {offsets = [0, 16], sizes = [2, 8], strides = [1, 1]} : vector<2x32xf32> to vector<2x8xf32>
    %660 = math.tanh %659 : vector<2x8xf32>
    %661 = vector.extract_strided_slice %642 {offsets = [0, 24], sizes = [2, 8], strides = [1, 1]} : vector<2x32xf32> to vector<2x8xf32>
    %cst_273 = arith.constant 5.000000e-01 : f32
    %662 = vector.broadcast %cst_273 : f32 to vector<2x8xf32>
    %663 = arith.mulf %662, %661 : vector<2x8xf32>
    %664 = math.tanh %663 : vector<2x8xf32>
    %cst_274 = arith.constant 5.000000e-01 : f32
    %665 = vector.broadcast %cst_274 : f32 to vector<2x8xf32>
    %666 = arith.mulf %665, %664 : vector<2x8xf32>
    %cst_275 = arith.constant 5.000000e-01 : f32
    %667 = vector.broadcast %cst_275 : f32 to vector<2x8xf32>
    %668 = arith.addf %666, %667 : vector<2x8xf32>
    %669 = arith.mulf %658, %631 : vector<2x8xf32>
    %670 = arith.mulf %650, %660 : vector<2x8xf32>
    %671 = arith.addf %669, %670 : vector<2x8xf32>
    %672 = math.tanh %671 : vector<2x8xf32>
    %673 = arith.mulf %668, %672 : vector<2x8xf32>
    %674 = arith.index_cast %c6_i32_263 : i32 to index
    %c0_276 = arith.constant 0 : index
    %c0_277 = arith.constant 0 : index
    %675 = vector.load %arg15[%674, %c0_276, %c0_277] : memref<8x2x8xf32, #tpu.memory_space<vmem>>, vector<1x2x8xf32>
    %676 = vector.shape_cast %675 : vector<1x2x8xf32> to vector<2x8xf32>
    %677 = vector.shape_cast %673 : vector<2x8xf32> to vector<1x2x8xf32>
    tpu.vector_store %arg15[%674, %c0_276, %c0_277], %677 {strides = array<i32>} : memref<8x2x8xf32, #tpu.memory_space<vmem>>, vector<1x2x8xf32>,
    %c7_i32_278 = arith.constant 7 : i32
    %678 = arith.index_cast %c7_i32_278 : i32 to index
    %c0_279 = arith.constant 0 : index
    %c0_280 = arith.constant 0 : index
    %679 = vector.load %arg14[%678, %c0_279, %c0_280] : memref<8x2x32xf32, #tpu.memory_space<vmem>>, vector<1x2x32xf32>
    %680 = vector.shape_cast %679 : vector<1x2x32xf32> to vector<2x32xf32>
    %cst_281 = arith.constant dense<0.000000e+00> : vector<2x32xf32>
    %681 = tpu.matmul %673, %395, %cst_281 {dimension_numbers = #tpu.dot_dimension_numbers<[1], [0], [0], [1], [0, 0, 1, 1], [], []>} : vector<2x8xf32>, vector<8x32xf32>, vector<2x32xf32> -> vector<2x32xf32>
    %682 = arith.addf %680, %681 : vector<2x32xf32>
    %683 = vector.extract_strided_slice %682 {offsets = [0, 0], sizes = [2, 8], strides = [1, 1]} : vector<2x32xf32> to vector<2x8xf32>
    %cst_282 = arith.constant 5.000000e-01 : f32
    %684 = vector.broadcast %cst_282 : f32 to vector<2x8xf32>
    %685 = arith.mulf %684, %683 : vector<2x8xf32>
    %686 = math.tanh %685 : vector<2x8xf32>
    %cst_283 = arith.constant 5.000000e-01 : f32
    %687 = vector.broadcast %cst_283 : f32 to vector<2x8xf32>
    %688 = arith.mulf %687, %686 : vector<2x8xf32>
    %cst_284 = arith.constant 5.000000e-01 : f32
    %689 = vector.broadcast %cst_284 : f32 to vector<2x8xf32>
    %690 = arith.addf %688, %689 : vector<2x8xf32>
    %691 = vector.extract_strided_slice %682 {offsets = [0, 8], sizes = [2, 8], strides = [1, 1]} : vector<2x32xf32> to vector<2x8xf32>
    %cst_285 = arith.constant 5.000000e-01 : f32
    %692 = vector.broadcast %cst_285 : f32 to vector<2x8xf32>
    %693 = arith.mulf %692, %691 : vector<2x8xf32>
    %694 = math.tanh %693 : vector<2x8xf32>
    %cst_286 = arith.constant 5.000000e-01 : f32
    %695 = vector.broadcast %cst_286 : f32 to vector<2x8xf32>
    %696 = arith.mulf %695, %694 : vector<2x8xf32>
    %cst_287 = arith.constant 5.000000e-01 : f32
    %697 = vector.broadcast %cst_287 : f32 to vector<2x8xf32>
    %698 = arith.addf %696, %697 : vector<2x8xf32>
    %699 = vector.extract_strided_slice %682 {offsets = [0, 16], sizes = [2, 8], strides = [1, 1]} : vector<2x32xf32> to vector<2x8xf32>
    %700 = math.tanh %699 : vector<2x8xf32>
    %701 = vector.extract_strided_slice %682 {offsets = [0, 24], sizes = [2, 8], strides = [1, 1]} : vector<2x32xf32> to vector<2x8xf32>
    %cst_288 = arith.constant 5.000000e-01 : f32
    %702 = vector.broadcast %cst_288 : f32 to vector<2x8xf32>
    %703 = arith.mulf %702, %701 : vector<2x8xf32>
    %704 = math.tanh %703 : vector<2x8xf32>
    %cst_289 = arith.constant 5.000000e-01 : f32
    %705 = vector.broadcast %cst_289 : f32 to vector<2x8xf32>
    %706 = arith.mulf %705, %704 : vector<2x8xf32>
    %cst_290 = arith.constant 5.000000e-01 : f32
    %707 = vector.broadcast %cst_290 : f32 to vector<2x8xf32>
    %708 = arith.addf %706, %707 : vector<2x8xf32>
    %709 = arith.mulf %698, %671 : vector<2x8xf32>
    %710 = arith.mulf %690, %700 : vector<2x8xf32>
    %711 = arith.addf %709, %710 : vector<2x8xf32>
    %712 = math.tanh %711 : vector<2x8xf32>
    %713 = arith.mulf %708, %712 : vector<2x8xf32>
    %714 = arith.index_cast %c7_i32_278 : i32 to index
    %c0_291 = arith.constant 0 : index
    %c0_292 = arith.constant 0 : index
    %715 = vector.load %arg15[%714, %c0_291, %c0_292] : memref<8x2x8xf32, #tpu.memory_space<vmem>>, vector<1x2x8xf32>
    %716 = vector.shape_cast %715 : vector<1x2x8xf32> to vector<2x8xf32>
    %717 = vector.shape_cast %713 : vector<2x8xf32> to vector<1x2x8xf32>
    tpu.vector_store %arg15[%714, %c0_291, %c0_292], %717 {strides = array<i32>} : memref<8x2x8xf32, #tpu.memory_space<vmem>>, vector<1x2x8xf32>,
    %c8_i32_293 = arith.constant 8 : i32
    %c0_294 = arith.constant 0 : index
    %c0_295 = arith.constant 0 : index
    %c0_296 = arith.constant 0 : index
    %718 = vector.load %arg15[%c0_294, %c0_295, %c0_296] : memref<8x2x8xf32, #tpu.memory_space<vmem>>, vector<8x1x8xf32>
    %719 = vector.shape_cast %718 : vector<8x1x8xf32> to vector<8x8xf32>
    %c0_297 = arith.constant 0 : index
    %c0_298 = arith.constant 0 : index
    %c0_299 = arith.constant 0 : index
    %720 = vector.load %arg11[%c0_297, %c0_298, %c0_299] : memref<2x8x8xf32, #tpu.memory_space<vmem>>, vector<1x8x8xf32>
    %721 = vector.shape_cast %720 : vector<1x8x8xf32> to vector<8x8xf32>
    %722 = vector.shape_cast %719 : vector<8x8xf32> to vector<1x8x8xf32>
    tpu.vector_store %arg11[%c0_297, %c0_298, %c0_299], %722 {strides = array<i32>} : memref<2x8x8xf32, #tpu.memory_space<vmem>>, vector<1x8x8xf32>,
    %c0_300 = arith.constant 0 : index
    %c1_301 = arith.constant 1 : index
    %c0_302 = arith.constant 0 : index
    %723 = vector.load %arg15[%c0_300, %c1_301, %c0_302] : memref<8x2x8xf32, #tpu.memory_space<vmem>>, vector<8x1x8xf32>
    %724 = vector.shape_cast %723 : vector<8x1x8xf32> to vector<8x8xf32>
    %c1_303 = arith.constant 1 : index
    %c0_304 = arith.constant 0 : index
    %c0_305 = arith.constant 0 : index
    %725 = vector.load %arg11[%c1_303, %c0_304, %c0_305] : memref<2x8x8xf32, #tpu.memory_space<vmem>>, vector<1x8x8xf32>
    %726 = vector.shape_cast %725 : vector<1x8x8xf32> to vector<8x8xf32>
    %727 = vector.shape_cast %724 : vector<8x8xf32> to vector<1x8x8xf32>
    tpu.vector_store %arg11[%c1_303, %c0_304, %c0_305], %727 {strides = array<i32>} : memref<2x8x8xf32, #tpu.memory_space<vmem>>, vector<1x8x8xf32>,
    return
  }
}

</mosaic_0001>

<llo_original>
// kernel: recurrent_autoencoder_forward.1
$region0: #{recurrent_autoencoder_forward.1}
  #allocation0 [shape = 'u32[]', space=smem, size = 0x4, offset = 0x4, fixed_abs, tag = 'smem constant byte address 0x4 - core index']
  #allocation1 [shape = 'u32[72,128]{1,0:T(1,128)}', space=vmem, size = 0x9000, scoped, tag = 'internal scratch']
  #allocation2 [shape = 'f32[8,2,128]{2,1,0:T(2,128)}', space=vmem, size = 0x2000, scoped, tag = 'scratch operand']
  #allocation3 [shape = 'f32[8,2,32]{2,1,0:T(2,128)}', space=vmem, size = 0x2000, scoped, tag = 'scratch operand']
  #allocation4 [shape = 'f32[8,2,32]{2,1,0:T(2,128)}', space=vmem, size = 0x2000, scoped, tag = 'scratch operand']
  #allocation5 [shape = 'f32[8,2,8]{2,1,0:T(2,128)}', space=vmem, size = 0x2000, scoped, tag = 'scratch operand']
  %s0 = inlined_call_operand.hbm [shape: f32[2,8,8], index: 0, kind: input, shape index: {}]
  %s1 = inlined_call_operand.vmem [shape: f32[8,128], index: 1, kind: input, shape index: {}]
  %s2 = inlined_call_operand.hbm [shape: f32[32,128], index: 2, kind: input, shape index: {}]
  %s3 = inlined_call_operand.vmem [shape: f32[1,128], index: 3, kind: input, shape index: {}]
  %s4 = inlined_call_operand.hbm [shape: f32[32,32], index: 4, kind: input, shape index: {}]
  %s5 = inlined_call_operand.hbm [shape: f32[1,32], index: 5, kind: input, shape index: {}]
  %s6 = inlined_call_operand.hbm [shape: f32[32,32], index: 6, kind: input, shape index: {}]
  %s7 = inlined_call_operand.hbm [shape: f32[1,32], index: 7, kind: input, shape index: {}]
  %s8 = inlined_call_operand.hbm [shape: f32[32,32], index: 8, kind: input, shape index: {}]
  %s9 = inlined_call_operand.hbm [shape: f32[8,32], index: 9, kind: input, shape index: {}]
  %s10 = inlined_call_operand.hbm [shape: f32[1,32], index: 10, kind: input, shape index: {}]
  %s11 = inlined_call_operand.vmem [shape: f32[2,8,8], index: 11, kind: output, shape index: {}]
  %s12 = sld [smem:[#allocation0]]
  $region90: #{recurrent_autoencoder_forward.1} parent=0
    _
  %s14 = ssub.s32 1, %s12
  %s15 = scalar_select 0, %s14, %s12
  $region1: #{recurrent_autoencoder_forward.1} parent=0
    #allocation6 [shape = 'u8[8192]{0}', space=vmem, size = 0x2000, scoped, tag = 'input window, operand 0, single buffered']
    #allocation7 [shape = 's32[1]{0}', space=sflag, size = 0x4, scoped, tag = 'scoped memory for recurrent_autoencoder_forward.1']
    #allocation8 [shape = 'u8[16384]{0}', space=vmem, size = 0x4000, scoped, tag = 'input window, operand 2, single buffered']
    #allocation9 [shape = 's32[1]{0}', space=sflag, size = 0x4, scoped, tag = 'scoped memory for recurrent_autoencoder_forward.1']
    #allocation10 [shape = 'u8[16384]{0}', space=vmem, size = 0x4000, scoped, tag = 'input window, operand 4, single buffered']
    #allocation11 [shape = 'u8[512]{0}', space=vmem, size = 0x400, scoped, tag = 'input window, operand 5, single buffered']
    #allocation12 [shape = 's32[1]{0}', space=sflag, size = 0x4, scoped, tag = 'scoped memory for recurrent_autoencoder_forward.1']
    #allocation13 [shape = 'u8[16384]{0}', space=vmem, size = 0x4000, scoped, tag = 'input window, operand 6, single buffered']
    #allocation14 [shape = 'u8[512]{0}', space=vmem, size = 0x400, scoped, tag = 'input window, operand 7, single buffered']
    #allocation15 [shape = 's32[1]{0}', space=sflag, size = 0x4, scoped, tag = 'scoped memory for recurrent_autoencoder_forward.1']
    #allocation16 [shape = 'u8[16384]{0}', space=vmem, size = 0x4000, scoped, tag = 'input window, operand 8, single buffered']
    #allocation17 [shape = 'u8[4096]{0}', space=vmem, size = 0x1000, scoped, tag = 'input window, operand 9, single buffered']
    #allocation18 [shape = 's32[1]{0}', space=sflag, size = 0x4, scoped, tag = 'scoped memory for recurrent_autoencoder_forward.1']
    #allocation19 [shape = 'u8[512]{0}', space=vmem, size = 0x400, scoped, tag = 'input window, operand 10, single buffered']
    %16 = vsyncpa [#allocation7], 0
    %17 = vsyncpa [#allocation9], 0
    %18 = vsyncpa [#allocation12], 0
    %19 = vsyncpa [#allocation15], 0
    %20 = vsyncpa [#allocation18], 0
    // Predicated region
    $region2: #{recurrent_autoencoder_forward.1} parent=1 // pred_check
      _
    $region3: #{recurrent_autoencoder_forward.1} parent=1 // pred_check_branch
      %22 = sbr.rel (0) target = $region5
    $region4: #{recurrent_autoencoder_forward.1} parent=1 // pred_region
      %24 = vsyncadd [#allocation7], 0
      %s25 = sshll.u32 %s0, 4
      %s26 = int_to_ptr.hbm [resolvable:$true] %s25
      %s27 = sshll.u32 [#allocation6], 4
      %s28 = int_to_ptr.vmem [resolvable:$true] %s27
      %33 = dma.hbm_to_vmem [thread:$0]  %s26, 256, %s28, [#allocation7], 128, 128, 8
    $region5: #{recurrent_autoencoder_forward.1} parent=1 // pred_fallthru
      _
    // Predicated region
    $region6: #{recurrent_autoencoder_forward.1} parent=1 // pred_check
      _
    $region7: #{recurrent_autoencoder_forward.1} parent=1 // pred_check_branch
      %35 = sbr.rel (0) target = $region9
    $region8: #{recurrent_autoencoder_forward.1} parent=1 // pred_region
      _
    $region9: #{recurrent_autoencoder_forward.1} parent=1 // pred_fallthru
      _
    // Predicated region
    $region10: #{recurrent_autoencoder_forward.1} parent=1 // pred_check
      _
    $region11: #{recurrent_autoencoder_forward.1} parent=1 // pred_check_branch
      %37 = sbr.rel (0) target = $region13
    $region12: #{recurrent_autoencoder_forward.1} parent=1 // pred_region
      %39 = vsyncadd [#allocation9], 0
      %s40 = sshll.u32 %s2, 4
      %s41 = int_to_ptr.hbm [resolvable:$true] %s40
      %s42 = sshll.u32 [#allocation8], 4
      %s43 = int_to_ptr.vmem [resolvable:$true] %s42
      %48 = dma.hbm_to_vmem [thread:$0]  %s41, 512, %s43, [#allocation9], 128, 128, 8
    $region13: #{recurrent_autoencoder_forward.1} parent=1 // pred_fallthru
      _
    // Predicated region
    $region14: #{recurrent_autoencoder_forward.1} parent=1 // pred_check
      _
    $region15: #{recurrent_autoencoder_forward.1} parent=1 // pred_check_branch
      %50 = sbr.rel (0) target = $region17
    $region16: #{recurrent_autoencoder_forward.1} parent=1 // pred_region
      _
    $region17: #{recurrent_autoencoder_forward.1} parent=1 // pred_fallthru
      _
    // Predicated region
    $region18: #{recurrent_autoencoder_forward.1} parent=1 // pred_check
      _
    $region19: #{recurrent_autoencoder_forward.1} parent=1 // pred_check_branch
      %52 = sbr.rel (0) target = $region21
    $region20: #{recurrent_autoencoder_forward.1} parent=1 // pred_region
      %54 = vsyncadd [#allocation9], 0
      %s55 = sshll.u32 %s4, 4
      %s56 = int_to_ptr.hbm [resolvable:$true] %s55
      %s57 = sshll.u32 [#allocation10], 4
      %s58 = int_to_ptr.vmem [resolvable:$true] %s57
      %63 = dma.hbm_to_vmem [thread:$0]  %s56, 512, %s58, [#allocation9], 128, 128, 8
    $region21: #{recurrent_autoencoder_forward.1} parent=1 // pred_fallthru
      _
    // Predicated region
    $region22: #{recurrent_autoencoder_forward.1} parent=1 // pred_check
      _
    $region23: #{recurrent_autoencoder_forward.1} parent=1 // pred_check_branch
      %65 = sbr.rel (0) target = $region25
    $region24: #{recurrent_autoencoder_forward.1} parent=1 // pred_region
      %67 = vsyncadd [#allocation12], 0
      %s69 = sshll.u32 %s5, 4
      %s70 = int_to_ptr.hbm [resolvable:$true] %s69
      %s71 = sshll.u32 [#allocation11], 4
      %s72 = int_to_ptr.vmem [resolvable:$true] %s71
      %74 = dma.hbm_to_vmem [thread:$0]  %s70, 16, %s72, [#allocation12]
    $region25: #{recurrent_autoencoder_forward.1} parent=1 // pred_fallthru
      _
    // Predicated region
    $region26: #{recurrent_autoencoder_forward.1} parent=1 // pred_check
      _
    $region27: #{recurrent_autoencoder_forward.1} parent=1 // pred_check_branch
      %76 = sbr.rel (0) target = $region29
    $region28: #{recurrent_autoencoder_forward.1} parent=1 // pred_region
      %78 = vsyncadd [#allocation12], 0
      %s79 = sshll.u32 %s6, 4
      %s80 = int_to_ptr.hbm [resolvable:$true] %s79
      %s81 = sshll.u32 [#allocation13], 4
      %s82 = int_to_ptr.vmem [resolvable:$true] %s81
      %87 = dma.hbm_to_vmem [thread:$0]  %s80, 512, %s82, [#allocation12], 128, 128, 8
    $region29: #{recurrent_autoencoder_forward.1} parent=1 // pred_fallthru
      _
    // Predicated region
    $region30: #{recurrent_autoencoder_forward.1} parent=1 // pred_check
      _
    $region31: #{recurrent_autoencoder_forward.1} parent=1 // pred_check_branch
      %89 = sbr.rel (0) target = $region33
    $region32: #{recurrent_autoencoder_forward.1} parent=1 // pred_region
      %91 = vsyncadd [#allocation15], 0
      %s93 = sshll.u32 %s7, 4
      %s94 = int_to_ptr.hbm [resolvable:$true] %s93
      %s95 = sshll.u32 [#allocation14], 4
      %s96 = int_to_ptr.vmem [resolvable:$true] %s95
      %98 = dma.hbm_to_vmem [thread:$0]  %s94, 16, %s96, [#allocation15]
    $region33: #{recurrent_autoencoder_forward.1} parent=1 // pred_fallthru
      _
    // Predicated region
    $region34: #{recurrent_autoencoder_forward.1} parent=1 // pred_check
      _
    $region35: #{recurrent_autoencoder_forward.1} parent=1 // pred_check_branch
      %100 = sbr.rel (0) target = $region37
    $region36: #{recurrent_autoencoder_forward.1} parent=1 // pred_region
      %102 = vsyncadd [#allocation15], 0
      %s103 = sshll.u32 %s8, 4
      %s104 = int_to_ptr.hbm [resolvable:$true] %s103
      %s105 = sshll.u32 [#allocation16], 4
      %s106 = int_to_ptr.vmem [resolvable:$true] %s105
      %111 = dma.hbm_to_vmem [thread:$0]  %s104, 512, %s106, [#allocation15], 128, 128, 8
    $region37: #{recurrent_autoencoder_forward.1} parent=1 // pred_fallthru
      _
    // Predicated region
    $region38: #{recurrent_autoencoder_forward.1} parent=1 // pred_check
      _
    $region39: #{recurrent_autoencoder_forward.1} parent=1 // pred_check_branch
      %113 = sbr.rel (0) target = $region41
    $region40: #{recurrent_autoencoder_forward.1} parent=1 // pred_region
      %115 = vsyncadd [#allocation18], 0
      %s117 = sshll.u32 %s9, 4
      %s118 = int_to_ptr.hbm [resolvable:$true] %s117
      %s119 = sshll.u32 [#allocation17], 4
      %s120 = int_to_ptr.vmem [resolvable:$true] %s119
      %122 = dma.hbm_to_vmem [thread:$0]  %s118, 128, %s120, [#allocation18]
    $region41: #{recurrent_autoencoder_forward.1} parent=1 // pred_fallthru
      _
    // Predicated region
    $region42: #{recurrent_autoencoder_forward.1} parent=1 // pred_check
      _
    $region43: #{recurrent_autoencoder_forward.1} parent=1 // pred_check_branch
      %124 = sbr.rel (0) target = $region45
    $region44: #{recurrent_autoencoder_forward.1} parent=1 // pred_region
      %126 = vsyncadd [#allocation18], 0
      %s128 = sshll.u32 %s10, 4
      %s129 = int_to_ptr.hbm [resolvable:$true] %s128
      %s130 = sshll.u32 [#allocation19], 4
      %s131 = int_to_ptr.vmem [resolvable:$true] %s130
      %133 = dma.hbm_to_vmem [thread:$0]  %s129, 16, %s131, [#allocation18]
    $region45: #{recurrent_autoencoder_forward.1} parent=1 // pred_fallthru
      _
    // Predicated region
    $region46: #{recurrent_autoencoder_forward.1} parent=1 // pred_check
      _
    $region47: #{recurrent_autoencoder_forward.1} parent=1 // pred_check_branch
      %135 = sbr.rel (0) target = $region49
    $region48: #{recurrent_autoencoder_forward.1} parent=1 // pred_region
      %137 = dma.done [#allocation7], 256
    $region49: #{recurrent_autoencoder_forward.1} parent=1 // pred_fallthru
      _
    // Predicated region
    $region50: #{recurrent_autoencoder_forward.1} parent=1 // pred_check
      _
    $region51: #{recurrent_autoencoder_forward.1} parent=1 // pred_check_branch
      %139 = sbr.rel (0) target = $region53
    $region52: #{recurrent_autoencoder_forward.1} parent=1 // pred_region
      %141 = dma.done [#allocation9], 512
    $region53: #{recurrent_autoencoder_forward.1} parent=1 // pred_fallthru
      _
    // Predicated region
    $region54: #{recurrent_autoencoder_forward.1} parent=1 // pred_check
      _
    $region55: #{recurrent_autoencoder_forward.1} parent=1 // pred_check_branch
      %143 = sbr.rel (0) target = $region57
    $region56: #{recurrent_autoencoder_forward.1} parent=1 // pred_region
      %145 = dma.done [#allocation9], 512
    $region57: #{recurrent_autoencoder_forward.1} parent=1 // pred_fallthru
      _
    // Predicated region
    $region58: #{recurrent_autoencoder_forward.1} parent=1 // pred_check
      _
    $region59: #{recurrent_autoencoder_forward.1} parent=1 // pred_check_branch
      %147 = sbr.rel (0) target = $region61
    $region60: #{recurrent_autoencoder_forward.1} parent=1 // pred_region
      %149 = dma.done [#allocation12], 16
    $region61: #{recurrent_autoencoder_forward.1} parent=1 // pred_fallthru
      _
    // Predicated region
    $region62: #{recurrent_autoencoder_forward.1} parent=1 // pred_check
      _
    $region63: #{recurrent_autoencoder_forward.1} parent=1 // pred_check_branch
      %151 = sbr.rel (0) target = $region65
    $region64: #{recurrent_autoencoder_forward.1} parent=1 // pred_region
      %153 = dma.done [#allocation12], 512
    $region65: #{recurrent_autoencoder_forward.1} parent=1 // pred_fallthru
      _
    // Predicated region
    $region66: #{recurrent_autoencoder_forward.1} parent=1 // pred_check
      _
    $region67: #{recurrent_autoencoder_forward.1} parent=1 // pred_check_branch
      %155 = sbr.rel (0) target = $region69
    $region68: #{recurrent_autoencoder_forward.1} parent=1 // pred_region
      %157 = dma.done [#allocation15], 16
    $region69: #{recurrent_autoencoder_forward.1} parent=1 // pred_fallthru
      _
    // Predicated region
    $region70: #{recurrent_autoencoder_forward.1} parent=1 // pred_check
      _
    $region71: #{recurrent_autoencoder_forward.1} parent=1 // pred_check_branch
      %159 = sbr.rel (0) target = $region73
    $region72: #{recurrent_autoencoder_forward.1} parent=1 // pred_region
      %161 = dma.done [#allocation15], 512
    $region73: #{recurrent_autoencoder_forward.1} parent=1 // pred_fallthru
      _
    // Predicated region
    $region74: #{recurrent_autoencoder_forward.1} parent=1 // pred_check
      _
    $region75: #{recurrent_autoencoder_forward.1} parent=1 // pred_check_branch
      %163 = sbr.rel (0) target = $region77
    $region76: #{recurrent_autoencoder_forward.1} parent=1 // pred_region
      %165 = dma.done [#allocation18], 128
    $region77: #{recurrent_autoencoder_forward.1} parent=1 // pred_fallthru
      _
    // Predicated region
    $region78: #{recurrent_autoencoder_forward.1} parent=1 // pred_check
      _
    $region79: #{recurrent_autoencoder_forward.1} parent=1 // pred_check_branch
      %167 = sbr.rel (0) target = $region81
    $region80: #{recurrent_autoencoder_forward.1} parent=1 // pred_region
      %169 = dma.done [#allocation18], 16
    $region81: #{recurrent_autoencoder_forward.1} parent=1 // pred_fallthru
      _
    %v170 = vld [vmem:[%s1] sm:$0xff]
    %v171 = vld [vmem:[%s3] sm:$0x1]
    %v172 = vld [vmem:[#allocation6] sm:$0xff]
    %v174 = vperm.slane %v171, 0
    %vm176 = vcmask 64512
    %v178 = vsel %vm176, %v172, 0
    %180 = vmatpush.msra.mxu0 0.0
    %181 = vmatpush.msra.mxu0 0.0
    %182 = vmatpush.msra.mxu0 0.0
    %183 = vmatpush.msra.mxu0 0.0
    %184 = vmatpush.msra.mxu0 0.0
    %185 = vmatpush.msra.mxu0 0.0
    %186 = vmatpush.msra.mxu0 0.0
    %187 = vmatpush.msra.mxu0 0.0
    %188 = vmatpush.msra.mxu0 0.0
    %189 = vmatpush.msra.mxu0 0.0
    %190 = vmatpush.msra.mxu0 0.0
    %191 = vmatpush.msra.mxu0 0.0
    %192 = vmatpush.msra.mxu0 0.0
    %193 = vmatpush.msra.mxu0 0.0
    %194 = vmatpush.msra.mxu0 0.0
    %195 = vmatpush.msra.mxu0 %v170
    %196 = vmatmul.f32.gmra.mxu0 %v178
    %v197 = vpop.f32.mrf.mxu0
    %v198 = vadd.f32 %v174, %v197
    %199 = vdwg.mxu0
    %v201 = vrot.slane %v198, 1
    %v202 = vrot.slane %v198, 2
    %v203 = vrot.slane %v198, 3
    %v204 = vrot.slane %v198, 4
    %v205 = vrot.slane %v198, 5
    %v206 = vrot.slane %v198, 6
    %v207 = vrot.slane %v198, 7
    %215 = vst [vmem:[#allocation2] sm:$0x1] %v198
    %216 = vst [vmem:[#allocation2 + $0x2] sm:$0x1] %v201
    %217 = vst [vmem:[#allocation2 + $0x4] sm:$0x1] %v202
    %218 = vst [vmem:[#allocation2 + $0x6] sm:$0x1] %v203
    %219 = vst [vmem:[#allocation2 + $0x8] sm:$0x1] %v204
    %220 = vst [vmem:[#allocation2 + $0xa] sm:$0x1] %v205
    %221 = vst [vmem:[#allocation2 + $0xc] sm:$0x1] %v206
    %222 = vst [vmem:[#allocation2 + $0xe] sm:$0x1] %v207
    %s223 = scalar_lea.vmem [#allocation6], 8
    %v224 = vld [vmem:[%s223] sm:$0xff]
    %v226 = vsel %vm176, %v224, 0
    %228 = vmatpush.msra.mxu0 0.0
    %229 = vmatpush.msra.mxu0 0.0
    %230 = vmatpush.msra.mxu0 0.0
    %231 = vmatpush.msra.mxu0 0.0
    %232 = vmatpush.msra.mxu0 0.0
    %233 = vmatpush.msra.mxu0 0.0
    %234 = vmatpush.msra.mxu0 0.0
    %235 = vmatpush.msra.mxu0 0.0
    %236 = vmatpush.msra.mxu0 0.0
    %237 = vmatpush.msra.mxu0 0.0
    %238 = vmatpush.msra.mxu0 0.0
    %239 = vmatpush.msra.mxu0 0.0
    %240 = vmatpush.msra.mxu0 0.0
    %241 = vmatpush.msra.mxu0 0.0
    %242 = vmatpush.msra.mxu0 0.0
    %243 = vmatpush.msra.mxu0 %v170
    %244 = vmatmul.f32.gmra.mxu0 %v226
    %v245 = vpop.f32.mrf.mxu0
    %v246 = vadd.f32 %v174, %v245
    %247 = vdwg.mxu0
    %v249 = vrot.slane %v246, 1
    %v250 = vrot.slane %v246, 2
    %v251 = vrot.slane %v246, 3
    %v252 = vrot.slane %v246, 4
    %v253 = vrot.slane %v246, 5
    %v254 = vrot.slane %v246, 6
    %v255 = vrot.slane %v246, 7
    %263 = vst [vmem:[#allocation2 + $0x1] sm:$0x1] %v246
    %264 = vst [vmem:[#allocation2 + $0x3] sm:$0x1] %v249
    %265 = vst [vmem:[#allocation2 + $0x5] sm:$0x1] %v250
    %266 = vst [vmem:[#allocation2 + $0x7] sm:$0x1] %v251
    %267 = vst [vmem:[#allocation2 + $0x9] sm:$0x1] %v252
    %268 = vst [vmem:[#allocation2 + $0xb] sm:$0x1] %v253
    %269 = vst [vmem:[#allocation2 + $0xd] sm:$0x1] %v254
    %270 = vst [vmem:[#allocation2 + $0xf] sm:$0x1] %v255
    %v271 = vld [vmem:[#allocation8] sm:$0xff]
    %v272 = vld [vmem:[#allocation8 + $0x8] sm:$0xff]
    %v273 = vld [vmem:[#allocation8 + $0x10] sm:$0xff]
    %v274 = vld [vmem:[#allocation8 + $0x18] sm:$0xff]
    %v275 = vld [vmem:[#allocation2] sm:$0x3]
    %vm276 = vcmask 261120
    %v278 = vsel %vm276, 0.0, 0
    %280 = vmatpush.msra.mxu0 0.0
    %281 = vmatpush.msra.mxu0 0.0
    %282 = vmatpush.msra.mxu0 0.0
    %283 = vmatpush.msra.mxu0 0.0
    %284 = vmatpush.msra.mxu0 0.0
    %285 = vmatpush.msra.mxu0 0.0
    %286 = vmatpush.msra.mxu0 0.0
    %287 = vmatpush.msra.mxu0 0.0
    %288 = vmatpush.msra.mxu0 0.0
    %289 = vmatpush.msra.mxu0 0.0
    %290 = vmatpush.msra.mxu0 0.0
    %291 = vmatpush.msra.mxu0 0.0
    %292 = vmatpush.msra.mxu0 %v274
    %293 = vmatpush.msra.mxu0 %v273
    %294 = vmatpush.msra.mxu0 %v272
    %295 = vmatpush.msra.mxu0 %v271
    %296 = vmatmul.f32.gmra.mxu0 %v278
    %v297 = vpop.f32.mrf.mxu0
    %v298 = vadd.f32 0.0, %v297
    %299 = vdwg.mxu0
    %v300 = vadd.f32 %v275, %v298
    %v301 = vmul.f32 %v300, 0.5
    %v302 = vtanh.pop %v301
    %v303 = vmul.f32 %v302, 0.5
    %v304 = vadd.f32 %v303, 0.5
    %v305 = vtanh.pop %v300
    %v306 = vmul.f32 %v304, 0.0
    %308 = vrot.lane.b32.xlu0 %v305, 64
    %v309 = vpop.permute.xlu0 %308
    %v311 = vmul.f32 %v304, %v309
    %313 = vrot.lane.b32.xlu0 %v311, 32
    %v314 = vpop.permute.xlu0 %313
    %v316 = vadd.f32 %v306, %v314
    %v317 = vtanh.pop %v316
    %319 = vrot.lane.b32.xlu0 %v317, 64
    %v320 = vpop.permute.xlu0 %319
    %v322 = vmul.f32 %v304, %v320
    %324 = vrot.lane.b32.xlu0 %v322, 32
    %v325 = vpop.permute.xlu0 %324
    %vm327 = vcmask 254976
    %328 = vst.msk [vmem:[#allocation3] sm:$0x3] %vm327, %v325
    %s329 = scalar_lea.vmem [#allocation2], 2
    %v330 = vld [vmem:[%s329] sm:$0x3]
    %v331 = vsel %vm276, %v325, 0
    %333 = vmatpush.msra.mxu0 0.0
    %334 = vmatpush.msra.mxu0 0.0
    %335 = vmatpush.msra.mxu0 0.0
    %336 = vmatpush.msra.mxu0 0.0
    %337 = vmatpush.msra.mxu0 0.0
    %338 = vmatpush.msra.mxu0 0.0
    %339 = vmatpush.msra.mxu0 0.0
    %340 = vmatpush.msra.mxu0 0.0
    %341 = vmatpush.msra.mxu0 0.0
    %342 = vmatpush.msra.mxu0 0.0
    %343 = vmatpush.msra.mxu0 0.0
    %344 = vmatpush.msra.mxu0 0.0
    %345 = vmatpush.msra.mxu0 %v274
    %346 = vmatpush.msra.mxu0 %v273
    %347 = vmatpush.msra.mxu0 %v272
    %348 = vmatpush.msra.mxu0 %v271
    %349 = vmatmul.f32.gmra.mxu0 %v331
    %v350 = vpop.f32.mrf.mxu0
    %v351 = vadd.f32 0.0, %v350
    %352 = vdwg.mxu0
    %v353 = vadd.f32 %v330, %v351
    %v354 = vmul.f32 %v353, 0.5
    %v355 = vtanh.pop %v354
    %v356 = vmul.f32 %v355, 0.5
    %v357 = vadd.f32 %v356, 0.5
    %v358 = vtanh.pop %v353
    %v359 = vmul.f32 %v357, %v316
    %361 = vrot.lane.b32.xlu0 %v358, 64
    %v362 = vpop.permute.xlu0 %361
    %v364 = vmul.f32 %v357, %v362
    %366 = vrot.lane.b32.xlu0 %v364, 32
    %v367 = vpop.permute.xlu0 %366
    %v369 = vadd.f32 %v359, %v367
    %v370 = vtanh.pop %v369
    %372 = vrot.lane.b32.xlu0 %v370, 64
    %v373 = vpop.permute.xlu0 %372
    %v375 = vmul.f32 %v357, %v373
    %377 = vrot.lane.b32.xlu0 %v375, 32
    %v378 = vpop.permute.xlu0 %377
    %s380 = scalar_lea.vmem [#allocation3], 2
    %381 = vst.msk [vmem:[%s380] sm:$0x3] %vm327, %v378
    %s382 = scalar_lea.vmem [#allocation2], 4
    %v383 = vld [vmem:[%s382] sm:$0x3]
    %v384 = vsel %vm276, %v378, 0
    %386 = vmatpush.msra.mxu0 0.0
    %387 = vmatpush.msra.mxu0 0.0
    %388 = vmatpush.msra.mxu0 0.0
    %389 = vmatpush.msra.mxu0 0.0
    %390 = vmatpush.msra.mxu0 0.0
    %391 = vmatpush.msra.mxu0 0.0
    %392 = vmatpush.msra.mxu0 0.0
    %393 = vmatpush.msra.mxu0 0.0
    %394 = vmatpush.msra.mxu0 0.0
    %395 = vmatpush.msra.mxu0 0.0
    %396 = vmatpush.msra.mxu0 0.0
    %397 = vmatpush.msra.mxu0 0.0
    %398 = vmatpush.msra.mxu0 %v274
    %399 = vmatpush.msra.mxu0 %v273
    %400 = vmatpush.msra.mxu0 %v272
    %401 = vmatpush.msra.mxu0 %v271
    %402 = vmatmul.f32.gmra.mxu0 %v384
    %v403 = vpop.f32.mrf.mxu0
    %v404 = vadd.f32 0.0, %v403
    %405 = vdwg.mxu0
    %v406 = vadd.f32 %v383, %v404
    %v407 = vmul.f32 %v406, 0.5
    %v408 = vtanh.pop %v407
    %v409 = vmul.f32 %v408, 0.5
    %v410 = vadd.f32 %v409, 0.5
    %v411 = vtanh.pop %v406
    %v412 = vmul.f32 %v410, %v369
    %414 = vrot.lane.b32.xlu0 %v411, 64
    %v415 = vpop.permute.xlu0 %414
    %v417 = vmul.f32 %v410, %v415
    %419 = vrot.lane.b32.xlu0 %v417, 32
    %v420 = vpop.permute.xlu0 %419
    %v422 = vadd.f32 %v412, %v420
    %v423 = vtanh.pop %v422
    %425 = vrot.lane.b32.xlu0 %v423, 64
    %v426 = vpop.permute.xlu0 %425
    %v428 = vmul.f32 %v410, %v426
    %430 = vrot.lane.b32.xlu0 %v428, 32
    %v431 = vpop.permute.xlu0 %430
    %s433 = scalar_lea.vmem [#allocation3], 4
    %434 = vst.msk [vmem:[%s433] sm:$0x3] %vm327, %v431
    %s435 = scalar_lea.vmem [#allocation2], 6
    %v436 = vld [vmem:[%s435] sm:$0x3]
    %v437 = vsel %vm276, %v431, 0
    %439 = vmatpush.msra.mxu0 0.0
    %440 = vmatpush.msra.mxu0 0.0
    %441 = vmatpush.msra.mxu0 0.0
    %442 = vmatpush.msra.mxu0 0.0
    %443 = vmatpush.msra.mxu0 0.0
    %444 = vmatpush.msra.mxu0 0.0
    %445 = vmatpush.msra.mxu0 0.0
    %446 = vmatpush.msra.mxu0 0.0
    %447 = vmatpush.msra.mxu0 0.0
    %448 = vmatpush.msra.mxu0 0.0
    %449 = vmatpush.msra.mxu0 0.0
    %450 = vmatpush.msra.mxu0 0.0
    %451 = vmatpush.msra.mxu0 %v274
    %452 = vmatpush.msra.mxu0 %v273
    %453 = vmatpush.msra.mxu0 %v272
    %454 = vmatpush.msra.mxu0 %v271
    %455 = vmatmul.f32.gmra.mxu0 %v437
    %v456 = vpop.f32.mrf.mxu0
    %v457 = vadd.f32 0.0, %v456
    %458 = vdwg.mxu0
    %v459 = vadd.f32 %v436, %v457
    %v460 = vmul.f32 %v459, 0.5
    %v461 = vtanh.pop %v460
    %v462 = vmul.f32 %v461, 0.5
    %v463 = vadd.f32 %v462, 0.5
    %v464 = vtanh.pop %v459
    %v465 = vmul.f32 %v463, %v422
    %467 = vrot.lane.b32.xlu0 %v464, 64
    %v468 = vpop.permute.xlu0 %467
    %v470 = vmul.f32 %v463, %v468
    %472 = vrot.lane.b32.xlu0 %v470, 32
    %v473 = vpop.permute.xlu0 %472
    %v475 = vadd.f32 %v465, %v473
    %v476 = vtanh.pop %v475
    %478 = vrot.lane.b32.xlu0 %v476, 64
    %v479 = vpop.permute.xlu0 %478
    %v481 = vmul.f32 %v463, %v479
    %483 = vrot.lane.b32.xlu0 %v481, 32
    %v484 = vpop.permute.xlu0 %483
    %s486 = scalar_lea.vmem [#allocation3], 6
    %487 = vst.msk [vmem:[%s486] sm:$0x3] %vm327, %v484
    %s488 = scalar_lea.vmem [#allocation2], 8
    %v489 = vld [vmem:[%s488] sm:$0x3]
    %v490 = vsel %vm276, %v484, 0
    %492 = vmatpush.msra.mxu0 0.0
    %493 = vmatpush.msra.mxu0 0.0
    %494 = vmatpush.msra.mxu0 0.0
    %495 = vmatpush.msra.mxu0 0.0
    %496 = vmatpush.msra.mxu0 0.0
    %497 = vmatpush.msra.mxu0 0.0
    %498 = vmatpush.msra.mxu0 0.0
    %499 = vmatpush.msra.mxu0 0.0
    %500 = vmatpush.msra.mxu0 0.0
    %501 = vmatpush.msra.mxu0 0.0
    %502 = vmatpush.msra.mxu0 0.0
    %503 = vmatpush.msra.mxu0 0.0
    %504 = vmatpush.msra.mxu0 %v274
    %505 = vmatpush.msra.mxu0 %v273
    %506 = vmatpush.msra.mxu0 %v272
    %507 = vmatpush.msra.mxu0 %v271
    %508 = vmatmul.f32.gmra.mxu0 %v490
    %v509 = vpop.f32.mrf.mxu0
    %v510 = vadd.f32 0.0, %v509
    %511 = vdwg.mxu0
    %v512 = vadd.f32 %v489, %v510
    %v513 = vmul.f32 %v512, 0.5
    %v514 = vtanh.pop %v513
    %v515 = vmul.f32 %v514, 0.5
    %v516 = vadd.f32 %v515, 0.5
    %v517 = vtanh.pop %v512
    %v518 = vmul.f32 %v516, %v475
    %520 = vrot.lane.b32.xlu0 %v517, 64
    %v521 = vpop.permute.xlu0 %520
    %v523 = vmul.f32 %v516, %v521
    %525 = vrot.lane.b32.xlu0 %v523, 32
    %v526 = vpop.permute.xlu0 %525
    %v528 = vadd.f32 %v518, %v526
    %v529 = vtanh.pop %v528
    %531 = vrot.lane.b32.xlu0 %v529, 64
    %v532 = vpop.permute.xlu0 %531
    %v534 = vmul.f32 %v516, %v532
    %536 = vrot.lane.b32.xlu0 %v534, 32
    %v537 = vpop.permute.xlu0 %536
    %s539 = scalar_lea.vmem [#allocation3], 8
    %540 = vst.msk [vmem:[%s539] sm:$0x3] %vm327, %v537
    %s541 = scalar_lea.vmem [#allocation2], 10
    %v542 = vld [vmem:[%s541] sm:$0x3]
    %v543 = vsel %vm276, %v537, 0
    %545 = vmatpush.msra.mxu0 0.0
    %546 = vmatpush.msra.mxu0 0.0
    %547 = vmatpush.msra.mxu0 0.0
    %548 = vmatpush.msra.mxu0 0.0
    %549 = vmatpush.msra.mxu0 0.0
    %550 = vmatpush.msra.mxu0 0.0
    %551 = vmatpush.msra.mxu0 0.0
    %552 = vmatpush.msra.mxu0 0.0
    %553 = vmatpush.msra.mxu0 0.0
    %554 = vmatpush.msra.mxu0 0.0
    %555 = vmatpush.msra.mxu0 0.0
    %556 = vmatpush.msra.mxu0 0.0
    %557 = vmatpush.msra.mxu0 %v274
    %558 = vmatpush.msra.mxu0 %v273
    %559 = vmatpush.msra.mxu0 %v272
    %560 = vmatpush.msra.mxu0 %v271
    %561 = vmatmul.f32.gmra.mxu0 %v543
    %v562 = vpop.f32.mrf.mxu0
    %v563 = vadd.f32 0.0, %v562
    %564 = vdwg.mxu0
    %v565 = vadd.f32 %v542, %v563
    %v566 = vmul.f32 %v565, 0.5
    %v567 = vtanh.pop %v566
    %v568 = vmul.f32 %v567, 0.5
    %v569 = vadd.f32 %v568, 0.5
    %v570 = vtanh.pop %v565
    %v571 = vmul.f32 %v569, %v528
    %573 = vrot.lane.b32.xlu0 %v570, 64
    %v574 = vpop.permute.xlu0 %573
    %v576 = vmul.f32 %v569, %v574
    %578 = vrot.lane.b32.xlu0 %v576, 32
    %v579 = vpop.permute.xlu0 %578
    %v581 = vadd.f32 %v571, %v579
    %v582 = vtanh.pop %v581
    %584 = vrot.lane.b32.xlu0 %v582, 64
    %v585 = vpop.permute.xlu0 %584
    %v587 = vmul.f32 %v569, %v585
    %589 = vrot.lane.b32.xlu0 %v587, 32
    %v590 = vpop.permute.xlu0 %589
    %s592 = scalar_lea.vmem [#allocation3], 10
    %593 = vst.msk [vmem:[%s592] sm:$0x3] %vm327, %v590
    %s594 = scalar_lea.vmem [#allocation2], 12
    %v595 = vld [vmem:[%s594] sm:$0x3]
    %v596 = vsel %vm276, %v590, 0
    %598 = vmatpush.msra.mxu0 0.0
    %599 = vmatpush.msra.mxu0 0.0
    %600 = vmatpush.msra.mxu0 0.0
    %601 = vmatpush.msra.mxu0 0.0
    %602 = vmatpush.msra.mxu0 0.0
    %603 = vmatpush.msra.mxu0 0.0
    %604 = vmatpush.msra.mxu0 0.0
    %605 = vmatpush.msra.mxu0 0.0
    %606 = vmatpush.msra.mxu0 0.0
    %607 = vmatpush.msra.mxu0 0.0
    %608 = vmatpush.msra.mxu0 0.0
    %609 = vmatpush.msra.mxu0 0.0
    %610 = vmatpush.msra.mxu0 %v274
    %611 = vmatpush.msra.mxu0 %v273
    %612 = vmatpush.msra.mxu0 %v272
    %613 = vmatpush.msra.mxu0 %v271
    %614 = vmatmul.f32.gmra.mxu0 %v596
    %v615 = vpop.f32.mrf.mxu0
    %v616 = vadd.f32 0.0, %v615
    %617 = vdwg.mxu0
    %v618 = vadd.f32 %v595, %v616
    %v619 = vmul.f32 %v618, 0.5
    %v620 = vtanh.pop %v619
    %v621 = vmul.f32 %v620, 0.5
    %v622 = vadd.f32 %v621, 0.5
    %v623 = vtanh.pop %v618
    %v624 = vmul.f32 %v622, %v581
    %626 = vrot.lane.b32.xlu0 %v623, 64
    %v627 = vpop.permute.xlu0 %626
    %v629 = vmul.f32 %v622, %v627
    %631 = vrot.lane.b32.xlu0 %v629, 32
    %v632 = vpop.permute.xlu0 %631
    %v634 = vadd.f32 %v624, %v632
    %v635 = vtanh.pop %v634
    %637 = vrot.lane.b32.xlu0 %v635, 64
    %v638 = vpop.permute.xlu0 %637
    %v640 = vmul.f32 %v622, %v638
    %642 = vrot.lane.b32.xlu0 %v640, 32
    %v643 = vpop.permute.xlu0 %642
    %s645 = scalar_lea.vmem [#allocation3], 12
    %646 = vst.msk [vmem:[%s645] sm:$0x3] %vm327, %v643
    %s647 = scalar_lea.vmem [#allocation2], 14
    %v648 = vld [vmem:[%s647] sm:$0x3]
    %v649 = vsel %vm276, %v643, 0
    %651 = vmatpush.msra.mxu0 0.0
    %652 = vmatpush.msra.mxu0 0.0
    %653 = vmatpush.msra.mxu0 0.0
    %654 = vmatpush.msra.mxu0 0.0
    %655 = vmatpush.msra.mxu0 0.0
    %656 = vmatpush.msra.mxu0 0.0
    %657 = vmatpush.msra.mxu0 0.0
    %658 = vmatpush.msra.mxu0 0.0
    %659 = vmatpush.msra.mxu0 0.0
    %660 = vmatpush.msra.mxu0 0.0
    %661 = vmatpush.msra.mxu0 0.0
    %662 = vmatpush.msra.mxu0 0.0
    %663 = vmatpush.msra.mxu0 %v274
    %664 = vmatpush.msra.mxu0 %v273
    %665 = vmatpush.msra.mxu0 %v272
    %666 = vmatpush.msra.mxu0 %v271
    %667 = vmatmul.f32.gmra.mxu0 %v649
    %v668 = vpop.f32.mrf.mxu0
    %v669 = vadd.f32 0.0, %v668
    %670 = vdwg.mxu0
    %v671 = vadd.f32 %v648, %v669
    %v672 = vmul.f32 %v671, 0.5
    %v673 = vtanh.pop %v672
    %v674 = vmul.f32 %v673, 0.5
    %v675 = vadd.f32 %v674, 0.5
    %v676 = vtanh.pop %v671
    %v677 = vmul.f32 %v675, %v634
    %679 = vrot.lane.b32.xlu0 %v676, 64
    %v680 = vpop.permute.xlu0 %679
    %v682 = vmul.f32 %v675, %v680
    %684 = vrot.lane.b32.xlu0 %v682, 32
    %v685 = vpop.permute.xlu0 %684
    %v687 = vadd.f32 %v677, %v685
    %v688 = vtanh.pop %v687
    %690 = vrot.lane.b32.xlu0 %v688, 64
    %v691 = vpop.permute.xlu0 %690
    %v693 = vmul.f32 %v675, %v691
    %695 = vrot.lane.b32.xlu0 %v693, 32
    %v696 = vpop.permute.xlu0 %695
    %s698 = scalar_lea.vmem [#allocation3], 14
    %699 = vst.msk [vmem:[%s698] sm:$0x3] %vm327, %v696
    %v700 = vld [vmem:[#allocation10] sm:$0xff]
    %v701 = vld [vmem:[#allocation10 + $0x8] sm:$0xff]
    %v702 = vld [vmem:[#allocation10 + $0x10] sm:$0xff]
    %v703 = vld [vmem:[#allocation10 + $0x18] sm:$0xff]
    %v704 = vld [vmem:[#allocation11] sm:$0x1]
    %v705 = vld [vmem:[#allocation13] sm:$0xff]
    %v706 = vld [vmem:[#allocation13 + $0x8] sm:$0xff]
    %v707 = vld [vmem:[#allocation13 + $0x10] sm:$0xff]
    %v708 = vld [vmem:[#allocation13 + $0x18] sm:$0xff]
    %v709 = vld [vmem:[#allocation14] sm:$0x1]
    %v710 = vld [vmem:[#allocation16] sm:$0xff]
    %v711 = vld [vmem:[#allocation16 + $0x8] sm:$0xff]
    %v712 = vld [vmem:[#allocation16 + $0x10] sm:$0xff]
    %v713 = vld [vmem:[#allocation16 + $0x18] sm:$0xff]
    %v714 = vld [vmem:[#allocation19] sm:$0x1]
    %v715 = vld [vmem:[#allocation3] sm:$0x1]
    %v716 = vld [vmem:[#allocation3 + $0x2] sm:$0x1]
    %v717 = vld [vmem:[#allocation3 + $0x4] sm:$0x1]
    %v718 = vld [vmem:[#allocation3 + $0x6] sm:$0x1]
    %v719 = vld [vmem:[#allocation3 + $0x8] sm:$0x1]
    %v720 = vld [vmem:[#allocation3 + $0xa] sm:$0x1]
    %v721 = vld [vmem:[#allocation3 + $0xc] sm:$0x1]
    %v722 = vld [vmem:[#allocation3 + $0xe] sm:$0x1]
    %v724 = vperm.slane %v704, 0
    %v734 = vrot.slane %v716, 7
    %vm735 = vcmask 1041409
    %v736 = vsel %vm735, %v734, %v715
    %v737 = vrot.slane %v717, 6
    %vm738 = vcmask 1042434
    %v739 = vsel %vm738, %v737, %v736
    %v740 = vrot.slane %v718, 5
    %vm741 = vcmask 1043459
    %v742 = vsel %vm741, %v740, %v739
    %v743 = vrot.slane %v719, 4
    %vm744 = vcmask 1044484
    %v745 = vsel %vm744, %v743, %v742
    %v746 = vrot.slane %v720, 3
    %vm747 = vcmask 1045509
    %v748 = vsel %vm747, %v746, %v745
    %v749 = vrot.slane %v721, 2
    %vm750 = vcmask 1046534
    %v751 = vsel %vm750, %v749, %v748
    %v752 = vrot.slane %v722, 1
    %vm753 = vcmask 1047559
    %v754 = vsel %vm753, %v752, %v751
    %v755 = vsel %vm276, %v754, 0
    %757 = vmatpush.msra.mxu0 0.0
    %758 = vmatpush.msra.mxu0 0.0
    %759 = vmatpush.msra.mxu0 0.0
    %760 = vmatpush.msra.mxu0 0.0
    %761 = vmatpush.msra.mxu0 0.0
    %762 = vmatpush.msra.mxu0 0.0
    %763 = vmatpush.msra.mxu0 0.0
    %764 = vmatpush.msra.mxu0 0.0
    %765 = vmatpush.msra.mxu0 0.0
    %766 = vmatpush.msra.mxu0 0.0
    %767 = vmatpush.msra.mxu0 0.0
    %768 = vmatpush.msra.mxu0 0.0
    %769 = vmatpush.msra.mxu0 %v703
    %770 = vmatpush.msra.mxu0 %v702
    %771 = vmatpush.msra.mxu0 %v701
    %772 = vmatpush.msra.mxu0 %v700
    %773 = vmatmul.f32.gmra.mxu0 %v755
    %v774 = vpop.f32.mrf.mxu0
    %v775 = vadd.f32 %v724, %v774
    %776 = vdwg.mxu0
    %vm777 = vcmp.ge.f32.partialorder %v775, 0.0
    %v778 = vmul.f32 %v775, 0.01
    %v779 = vsel %vm777, %v775, %v778
    %v781 = vperm.slane %v709, 0
    %v784 = vsel %vm276, %v779, 0
    %786 = vmatpush.msra.mxu0 0.0
    %787 = vmatpush.msra.mxu0 0.0
    %788 = vmatpush.msra.mxu0 0.0
    %789 = vmatpush.msra.mxu0 0.0
    %790 = vmatpush.msra.mxu0 0.0
    %791 = vmatpush.msra.mxu0 0.0
    %792 = vmatpush.msra.mxu0 0.0
    %793 = vmatpush.msra.mxu0 0.0
    %794 = vmatpush.msra.mxu0 0.0
    %795 = vmatpush.msra.mxu0 0.0
    %796 = vmatpush.msra.mxu0 0.0
    %797 = vmatpush.msra.mxu0 0.0
    %798 = vmatpush.msra.mxu0 %v708
    %799 = vmatpush.msra.mxu0 %v707
    %800 = vmatpush.msra.mxu0 %v706
    %801 = vmatpush.msra.mxu0 %v705
    %802 = vmatmul.f32.gmra.mxu0 %v784
    %v803 = vpop.f32.mrf.mxu0
    %v804 = vadd.f32 %v781, %v803
    %805 = vdwg.mxu0
    %vm806 = vcmp.ge.f32.partialorder %v804, 0.0
    %v807 = vmul.f32 %v804, 0.01
    %v808 = vsel %vm806, %v804, %v807
    %v810 = vperm.slane %v714, 0
    %v813 = vsel %vm276, %v808, 0
    %815 = vmatpush.msra.mxu0 0.0
    %816 = vmatpush.msra.mxu0 0.0
    %817 = vmatpush.msra.mxu0 0.0
    %818 = vmatpush.msra.mxu0 0.0
    %819 = vmatpush.msra.mxu0 0.0
    %820 = vmatpush.msra.mxu0 0.0
    %821 = vmatpush.msra.mxu0 0.0
    %822 = vmatpush.msra.mxu0 0.0
    %823 = vmatpush.msra.mxu0 0.0
    %824 = vmatpush.msra.mxu0 0.0
    %825 = vmatpush.msra.mxu0 0.0
    %826 = vmatpush.msra.mxu0 0.0
    %827 = vmatpush.msra.mxu0 %v713
    %828 = vmatpush.msra.mxu0 %v712
    %829 = vmatpush.msra.mxu0 %v711
    %830 = vmatpush.msra.mxu0 %v710
    %831 = vmatmul.f32.gmra.mxu0 %v813
    %v832 = vpop.f32.mrf.mxu0
    %v833 = vadd.f32 %v810, %v832
    %834 = vdwg.mxu0
    %v836 = vrot.slane %v833, 1
    %v837 = vrot.slane %v833, 2
    %v838 = vrot.slane %v833, 3
    %v839 = vrot.slane %v833, 4
    %v840 = vrot.slane %v833, 5
    %v841 = vrot.slane %v833, 6
    %v842 = vrot.slane %v833, 7
    %vm850 = vcmask 253952
    %851 = vst.msk [vmem:[#allocation4] sm:$0x1] %vm850, %v833
    %852 = vst.msk [vmem:[#allocation4 + $0x2] sm:$0x1] %vm850, %v836
    %853 = vst.msk [vmem:[#allocation4 + $0x4] sm:$0x1] %vm850, %v837
    %854 = vst.msk [vmem:[#allocation4 + $0x6] sm:$0x1] %vm850, %v838
    %855 = vst.msk [vmem:[#allocation4 + $0x8] sm:$0x1] %vm850, %v839
    %856 = vst.msk [vmem:[#allocation4 + $0xa] sm:$0x1] %vm850, %v840
    %857 = vst.msk [vmem:[#allocation4 + $0xc] sm:$0x1] %vm850, %v841
    %858 = vst.msk [vmem:[#allocation4 + $0xe] sm:$0x1] %vm850, %v842
    %v859 = vld [vmem:[#allocation3 + $0x1] sm:$0x1]
    %v860 = vld [vmem:[#allocation3 + $0x3] sm:$0x1]
    %v861 = vld [vmem:[#allocation3 + $0x5] sm:$0x1]
    %v862 = vld [vmem:[#allocation3 + $0x7] sm:$0x1]
    %v863 = vld [vmem:[#allocation3 + $0x9] sm:$0x1]
    %v864 = vld [vmem:[#allocation3 + $0xb] sm:$0x1]
    %v865 = vld [vmem:[#allocation3 + $0xd] sm:$0x1]
    %v866 = vld [vmem:[#allocation3 + $0xf] sm:$0x1]
    %v875 = vrot.slane %v860, 7
    %v876 = vsel %vm735, %v875, %v859
    %v877 = vrot.slane %v861, 6
    %v878 = vsel %vm738, %v877, %v876
    %v879 = vrot.slane %v862, 5
    %v880 = vsel %vm741, %v879, %v878
    %v881 = vrot.slane %v863, 4
    %v882 = vsel %vm744, %v881, %v880
    %v883 = vrot.slane %v864, 3
    %v884 = vsel %vm747, %v883, %v882
    %v885 = vrot.slane %v865, 2
    %v886 = vsel %vm750, %v885, %v884
    %v887 = vrot.slane %v866, 1
    %v888 = vsel %vm753, %v887, %v886
    %v889 = vsel %vm276, %v888, 0
    %891 = vmatpush.msra.mxu0 0.0
    %892 = vmatpush.msra.mxu0 0.0
    %893 = vmatpush.msra.mxu0 0.0
    %894 = vmatpush.msra.mxu0 0.0
    %895 = vmatpush.msra.mxu0 0.0
    %896 = vmatpush.msra.mxu0 0.0
    %897 = vmatpush.msra.mxu0 0.0
    %898 = vmatpush.msra.mxu0 0.0
    %899 = vmatpush.msra.mxu0 0.0
    %900 = vmatpush.msra.mxu0 0.0
    %901 = vmatpush.msra.mxu0 0.0
    %902 = vmatpush.msra.mxu0 0.0
    %903 = vmatpush.msra.mxu0 %v703
    %904 = vmatpush.msra.mxu0 %v702
    %905 = vmatpush.msra.mxu0 %v701
    %906 = vmatpush.msra.mxu0 %v700
    %907 = vmatmul.f32.gmra.mxu0 %v889
    %v908 = vpop.f32.mrf.mxu0
    %v909 = vadd.f32 %v724, %v908
    %910 = vdwg.mxu0
    %vm911 = vcmp.ge.f32.partialorder %v909, 0.0
    %v912 = vmul.f32 %v909, 0.01
    %v913 = vsel %vm911, %v909, %v912
    %v915 = vsel %vm276, %v913, 0
    %917 = vmatpush.msra.mxu0 0.0
    %918 = vmatpush.msra.mxu0 0.0
    %919 = vmatpush.msra.mxu0 0.0
    %920 = vmatpush.msra.mxu0 0.0
    %921 = vmatpush.msra.mxu0 0.0
    %922 = vmatpush.msra.mxu0 0.0
    %923 = vmatpush.msra.mxu0 0.0
    %924 = vmatpush.msra.mxu0 0.0
    %925 = vmatpush.msra.mxu0 0.0
    %926 = vmatpush.msra.mxu0 0.0
    %927 = vmatpush.msra.mxu0 0.0
    %928 = vmatpush.msra.mxu0 0.0
    %929 = vmatpush.msra.mxu0 %v708
    %930 = vmatpush.msra.mxu0 %v707
    %931 = vmatpush.msra.mxu0 %v706
    %932 = vmatpush.msra.mxu0 %v705
    %933 = vmatmul.f32.gmra.mxu0 %v915
    %v934 = vpop.f32.mrf.mxu0
    %v935 = vadd.f32 %v781, %v934
    %936 = vdwg.mxu0
    %vm937 = vcmp.ge.f32.partialorder %v935, 0.0
    %v938 = vmul.f32 %v935, 0.01
    %v939 = vsel %vm937, %v935, %v938
    %v941 = vsel %vm276, %v939, 0
    %943 = vmatpush.msra.mxu0 0.0
    %944 = vmatpush.msra.mxu0 0.0
    %945 = vmatpush.msra.mxu0 0.0
    %946 = vmatpush.msra.mxu0 0.0
    %947 = vmatpush.msra.mxu0 0.0
    %948 = vmatpush.msra.mxu0 0.0
    %949 = vmatpush.msra.mxu0 0.0
    %950 = vmatpush.msra.mxu0 0.0
    %951 = vmatpush.msra.mxu0 0.0
    %952 = vmatpush.msra.mxu0 0.0
    %953 = vmatpush.msra.mxu0 0.0
    %954 = vmatpush.msra.mxu0 0.0
    %955 = vmatpush.msra.mxu0 %v713
    %956 = vmatpush.msra.mxu0 %v712
    %957 = vmatpush.msra.mxu0 %v711
    %958 = vmatpush.msra.mxu0 %v710
    %959 = vmatmul.f32.gmra.mxu0 %v941
    %v960 = vpop.f32.mrf.mxu0
    %v961 = vadd.f32 %v810, %v960
    %962 = vdwg.mxu0
    %v964 = vrot.slane %v961, 1
    %v965 = vrot.slane %v961, 2
    %v966 = vrot.slane %v961, 3
    %v967 = vrot.slane %v961, 4
    %v968 = vrot.slane %v961, 5
    %v969 = vrot.slane %v961, 6
    %v970 = vrot.slane %v961, 7
    %978 = vst.msk [vmem:[#allocation4 + $0x1] sm:$0x1] %vm850, %v961
    %979 = vst.msk [vmem:[#allocation4 + $0x3] sm:$0x1] %vm850, %v964
    %980 = vst.msk [vmem:[#allocation4 + $0x5] sm:$0x1] %vm850, %v965
    %981 = vst.msk [vmem:[#allocation4 + $0x7] sm:$0x1] %vm850, %v966
    %982 = vst.msk [vmem:[#allocation4 + $0x9] sm:$0x1] %vm850, %v967
    %983 = vst.msk [vmem:[#allocation4 + $0xb] sm:$0x1] %vm850, %v968
    %984 = vst.msk [vmem:[#allocation4 + $0xd] sm:$0x1] %vm850, %v969
    %985 = vst.msk [vmem:[#allocation4 + $0xf] sm:$0x1] %vm850, %v970
    %v986 = vld [vmem:[#allocation17] sm:$0xff]
    %v987 = vld [vmem:[#allocation4] sm:$0x3]
    %v988 = vsel %vm176, 0.0, 0
    %990 = vmatpush.msra.mxu0 0.0
    %991 = vmatpush.msra.mxu0 0.0
    %992 = vmatpush.msra.mxu0 0.0
    %993 = vmatpush.msra.mxu0 0.0
    %994 = vmatpush.msra.mxu0 0.0
    %995 = vmatpush.msra.mxu0 0.0
    %996 = vmatpush.msra.mxu0 0.0
    %997 = vmatpush.msra.mxu0 0.0
    %998 = vmatpush.msra.mxu0 0.0
    %999 = vmatpush.msra.mxu0 0.0
    %1000 = vmatpush.msra.mxu0 0.0
    %1001 = vmatpush.msra.mxu0 0.0
    %1002 = vmatpush.msra.mxu0 0.0
    %1003 = vmatpush.msra.mxu0 0.0
    %1004 = vmatpush.msra.mxu0 0.0
    %1005 = vmatpush.msra.mxu0 %v986
    %1006 = vmatmul.f32.gmra.mxu0 %v988
    %v1007 = vpop.f32.mrf.mxu0
    %v1008 = vadd.f32 0.0, %v1007
    %1009 = vdwg.mxu0
    %v1010 = vadd.f32 %v987, %v1008
    %v1011 = vmul.f32 %v1010, 0.5
    %v1012 = vtanh.pop %v1011
    %v1013 = vmul.f32 %v1012, 0.5
    %v1014 = vadd.f32 %v1013, 0.5
    %v1015 = vtanh.pop %v1010
    %v1016 = vmul.f32 %v1014, 0.0
    %1018 = vrot.lane.b32.xlu0 %v1015, 112
    %v1019 = vpop.permute.xlu0 %1018
    %v1021 = vmul.f32 %v1014, %v1019
    %1023 = vrot.lane.b32.xlu0 %v1021, 8
    %v1024 = vpop.permute.xlu0 %1023
    %v1026 = vadd.f32 %v1016, %v1024
    %v1027 = vtanh.pop %v1026
    %1029 = vrot.lane.b32.xlu0 %v1027, 16
    %v1030 = vpop.permute.xlu0 %1029
    %v1032 = vmul.f32 %v1014, %v1030
    %1034 = vrot.lane.b32.xlu0 %v1032, 104
    %v1035 = vpop.permute.xlu0 %1034
    %vm1037 = vcmask 58368
    %1038 = vst.msk [vmem:[#allocation5] sm:$0x3] %vm1037, %v1035
    %s1039 = scalar_lea.vmem [#allocation4], 2
    %v1040 = vld [vmem:[%s1039] sm:$0x3]
    %v1041 = vsel %vm176, %v1035, 0
    %1043 = vmatpush.msra.mxu0 0.0
    %1044 = vmatpush.msra.mxu0 0.0
    %1045 = vmatpush.msra.mxu0 0.0
    %1046 = vmatpush.msra.mxu0 0.0
    %1047 = vmatpush.msra.mxu0 0.0
    %1048 = vmatpush.msra.mxu0 0.0
    %1049 = vmatpush.msra.mxu0 0.0
    %1050 = vmatpush.msra.mxu0 0.0
    %1051 = vmatpush.msra.mxu0 0.0
    %1052 = vmatpush.msra.mxu0 0.0
    %1053 = vmatpush.msra.mxu0 0.0
    %1054 = vmatpush.msra.mxu0 0.0
    %1055 = vmatpush.msra.mxu0 0.0
    %1056 = vmatpush.msra.mxu0 0.0
    %1057 = vmatpush.msra.mxu0 0.0
    %1058 = vmatpush.msra.mxu0 %v986
    %1059 = vmatmul.f32.gmra.mxu0 %v1041
    %v1060 = vpop.f32.mrf.mxu0
    %v1061 = vadd.f32 0.0, %v1060
    %1062 = vdwg.mxu0
    %v1063 = vadd.f32 %v1040, %v1061
    %v1064 = vmul.f32 %v1063, 0.5
    %v1065 = vtanh.pop %v1064
    %v1066 = vmul.f32 %v1065, 0.5
    %v1067 = vadd.f32 %v1066, 0.5
    %v1068 = vtanh.pop %v1063
    %v1069 = vmul.f32 %v1067, %v1026
    %1071 = vrot.lane.b32.xlu0 %v1068, 112
    %v1072 = vpop.permute.xlu0 %1071
    %v1074 = vmul.f32 %v1067, %v1072
    %1076 = vrot.lane.b32.xlu0 %v1074, 8
    %v1077 = vpop.permute.xlu0 %1076
    %v1079 = vadd.f32 %v1069, %v1077
    %v1080 = vtanh.pop %v1079
    %1082 = vrot.lane.b32.xlu0 %v1080, 16
    %v1083 = vpop.permute.xlu0 %1082
    %v1085 = vmul.f32 %v1067, %v1083
    %1087 = vrot.lane.b32.xlu0 %v1085, 104
    %v1088 = vpop.permute.xlu0 %1087
    %s1090 = scalar_lea.vmem [#allocation5], 2
    %1091 = vst.msk [vmem:[%s1090] sm:$0x3] %vm1037, %v1088
    %s1092 = scalar_lea.vmem [#allocation4], 4
    %v1093 = vld [vmem:[%s1092] sm:$0x3]
    %v1094 = vsel %vm176, %v1088, 0
    %1096 = vmatpush.msra.mxu0 0.0
    %1097 = vmatpush.msra.mxu0 0.0
    %1098 = vmatpush.msra.mxu0 0.0
    %1099 = vmatpush.msra.mxu0 0.0
    %1100 = vmatpush.msra.mxu0 0.0
    %1101 = vmatpush.msra.mxu0 0.0
    %1102 = vmatpush.msra.mxu0 0.0
    %1103 = vmatpush.msra.mxu0 0.0
    %1104 = vmatpush.msra.mxu0 0.0
    %1105 = vmatpush.msra.mxu0 0.0
    %1106 = vmatpush.msra.mxu0 0.0
    %1107 = vmatpush.msra.mxu0 0.0
    %1108 = vmatpush.msra.mxu0 0.0
    %1109 = vmatpush.msra.mxu0 0.0
    %1110 = vmatpush.msra.mxu0 0.0
    %1111 = vmatpush.msra.mxu0 %v986
    %1112 = vmatmul.f32.gmra.mxu0 %v1094
    %v1113 = vpop.f32.mrf.mxu0
    %v1114 = vadd.f32 0.0, %v1113
    %1115 = vdwg.mxu0
    %v1116 = vadd.f32 %v1093, %v1114
    %v1117 = vmul.f32 %v1116, 0.5
    %v1118 = vtanh.pop %v1117
    %v1119 = vmul.f32 %v1118, 0.5
    %v1120 = vadd.f32 %v1119, 0.5
    %v1121 = vtanh.pop %v1116
    %v1122 = vmul.f32 %v1120, %v1079
    %1124 = vrot.lane.b32.xlu0 %v1121, 112
    %v1125 = vpop.permute.xlu0 %1124
    %v1127 = vmul.f32 %v1120, %v1125
    %1129 = vrot.lane.b32.xlu0 %v1127, 8
    %v1130 = vpop.permute.xlu0 %1129
    %v1132 = vadd.f32 %v1122, %v1130
    %v1133 = vtanh.pop %v1132
    %1135 = vrot.lane.b32.xlu0 %v1133, 16
    %v1136 = vpop.permute.xlu0 %1135
    %v1138 = vmul.f32 %v1120, %v1136
    %1140 = vrot.lane.b32.xlu0 %v1138, 104
    %v1141 = vpop.permute.xlu0 %1140
    %s1143 = scalar_lea.vmem [#allocation5], 4
    %1144 = vst.msk [vmem:[%s1143] sm:$0x3] %vm1037, %v1141
    %s1145 = scalar_lea.vmem [#allocation4], 6
    %v1146 = vld [vmem:[%s1145] sm:$0x3]
    %v1147 = vsel %vm176, %v1141, 0
    %1149 = vmatpush.msra.mxu0 0.0
    %1150 = vmatpush.msra.mxu0 0.0
    %1151 = vmatpush.msra.mxu0 0.0
    %1152 = vmatpush.msra.mxu0 0.0
    %1153 = vmatpush.msra.mxu0 0.0
    %1154 = vmatpush.msra.mxu0 0.0
    %1155 = vmatpush.msra.mxu0 0.0
    %1156 = vmatpush.msra.mxu0 0.0
    %1157 = vmatpush.msra.mxu0 0.0
    %1158 = vmatpush.msra.mxu0 0.0
    %1159 = vmatpush.msra.mxu0 0.0
    %1160 = vmatpush.msra.mxu0 0.0
    %1161 = vmatpush.msra.mxu0 0.0
    %1162 = vmatpush.msra.mxu0 0.0
    %1163 = vmatpush.msra.mxu0 0.0
    %1164 = vmatpush.msra.mxu0 %v986
    %1165 = vmatmul.f32.gmra.mxu0 %v1147
    %v1166 = vpop.f32.mrf.mxu0
    %v1167 = vadd.f32 0.0, %v1166
    %1168 = vdwg.mxu0
    %v1169 = vadd.f32 %v1146, %v1167
    %v1170 = vmul.f32 %v1169, 0.5
    %v1171 = vtanh.pop %v1170
    %v1172 = vmul.f32 %v1171, 0.5
    %v1173 = vadd.f32 %v1172, 0.5
    %v1174 = vtanh.pop %v1169
    %v1175 = vmul.f32 %v1173, %v1132
    %1177 = vrot.lane.b32.xlu0 %v1174, 112
    %v1178 = vpop.permute.xlu0 %1177
    %v1180 = vmul.f32 %v1173, %v1178
    %1182 = vrot.lane.b32.xlu0 %v1180, 8
    %v1183 = vpop.permute.xlu0 %1182
    %v1185 = vadd.f32 %v1175, %v1183
    %v1186 = vtanh.pop %v1185
    %1188 = vrot.lane.b32.xlu0 %v1186, 16
    %v1189 = vpop.permute.xlu0 %1188
    %v1191 = vmul.f32 %v1173, %v1189
    %1193 = vrot.lane.b32.xlu0 %v1191, 104
    %v1194 = vpop.permute.xlu0 %1193
    %s1196 = scalar_lea.vmem [#allocation5], 6
    %1197 = vst.msk [vmem:[%s1196] sm:$0x3] %vm1037, %v1194
    %s1198 = scalar_lea.vmem [#allocation4], 8
    %v1199 = vld [vmem:[%s1198] sm:$0x3]
    %v1200 = vsel %vm176, %v1194, 0
    %1202 = vmatpush.msra.mxu0 0.0
    %1203 = vmatpush.msra.mxu0 0.0
    %1204 = vmatpush.msra.mxu0 0.0
    %1205 = vmatpush.msra.mxu0 0.0
    %1206 = vmatpush.msra.mxu0 0.0
    %1207 = vmatpush.msra.mxu0 0.0
    %1208 = vmatpush.msra.mxu0 0.0
    %1209 = vmatpush.msra.mxu0 0.0
    %1210 = vmatpush.msra.mxu0 0.0
    %1211 = vmatpush.msra.mxu0 0.0
    %1212 = vmatpush.msra.mxu0 0.0
    %1213 = vmatpush.msra.mxu0 0.0
    %1214 = vmatpush.msra.mxu0 0.0
    %1215 = vmatpush.msra.mxu0 0.0
    %1216 = vmatpush.msra.mxu0 0.0
    %1217 = vmatpush.msra.mxu0 %v986
    %1218 = vmatmul.f32.gmra.mxu0 %v1200
    %v1219 = vpop.f32.mrf.mxu0
    %v1220 = vadd.f32 0.0, %v1219
    %1221 = vdwg.mxu0
    %v1222 = vadd.f32 %v1199, %v1220
    %v1223 = vmul.f32 %v1222, 0.5
    %v1224 = vtanh.pop %v1223
    %v1225 = vmul.f32 %v1224, 0.5
    %v1226 = vadd.f32 %v1225, 0.5
    %v1227 = vtanh.pop %v1222
    %v1228 = vmul.f32 %v1226, %v1185
    %1230 = vrot.lane.b32.xlu0 %v1227, 112
    %v1231 = vpop.permute.xlu0 %1230
    %v1233 = vmul.f32 %v1226, %v1231
    %1235 = vrot.lane.b32.xlu0 %v1233, 8
    %v1236 = vpop.permute.xlu0 %1235
    %v1238 = vadd.f32 %v1228, %v1236
    %v1239 = vtanh.pop %v1238
    %1241 = vrot.lane.b32.xlu0 %v1239, 16
    %v1242 = vpop.permute.xlu0 %1241
    %v1244 = vmul.f32 %v1226, %v1242
    %1246 = vrot.lane.b32.xlu0 %v1244, 104
    %v1247 = vpop.permute.xlu0 %1246
    %s1249 = scalar_lea.vmem [#allocation5], 8
    %1250 = vst.msk [vmem:[%s1249] sm:$0x3] %vm1037, %v1247
    %s1251 = scalar_lea.vmem [#allocation4], 10
    %v1252 = vld [vmem:[%s1251] sm:$0x3]
    %v1253 = vsel %vm176, %v1247, 0
    %1255 = vmatpush.msra.mxu0 0.0
    %1256 = vmatpush.msra.mxu0 0.0
    %1257 = vmatpush.msra.mxu0 0.0
    %1258 = vmatpush.msra.mxu0 0.0
    %1259 = vmatpush.msra.mxu0 0.0
    %1260 = vmatpush.msra.mxu0 0.0
    %1261 = vmatpush.msra.mxu0 0.0
    %1262 = vmatpush.msra.mxu0 0.0
    %1263 = vmatpush.msra.mxu0 0.0
    %1264 = vmatpush.msra.mxu0 0.0
    %1265 = vmatpush.msra.mxu0 0.0
    %1266 = vmatpush.msra.mxu0 0.0
    %1267 = vmatpush.msra.mxu0 0.0
    %1268 = vmatpush.msra.mxu0 0.0
    %1269 = vmatpush.msra.mxu0 0.0
    %1270 = vmatpush.msra.mxu0 %v986
    %1271 = vmatmul.f32.gmra.mxu0 %v1253
    %v1272 = vpop.f32.mrf.mxu0
    %v1273 = vadd.f32 0.0, %v1272
    %1274 = vdwg.mxu0
    %v1275 = vadd.f32 %v1252, %v1273
    %v1276 = vmul.f32 %v1275, 0.5
    %v1277 = vtanh.pop %v1276
    %v1278 = vmul.f32 %v1277, 0.5
    %v1279 = vadd.f32 %v1278, 0.5
    %v1280 = vtanh.pop %v1275
    %v1281 = vmul.f32 %v1279, %v1238
    %1283 = vrot.lane.b32.xlu0 %v1280, 112
    %v1284 = vpop.permute.xlu0 %1283
    %v1286 = vmul.f32 %v1279, %v1284
    %1288 = vrot.lane.b32.xlu0 %v1286, 8
    %v1289 = vpop.permute.xlu0 %1288
    %v1291 = vadd.f32 %v1281, %v1289
    %v1292 = vtanh.pop %v1291
    %1294 = vrot.lane.b32.xlu0 %v1292, 16
    %v1295 = vpop.permute.xlu0 %1294
    %v1297 = vmul.f32 %v1279, %v1295
    %1299 = vrot.lane.b32.xlu0 %v1297, 104
    %v1300 = vpop.permute.xlu0 %1299
    %s1302 = scalar_lea.vmem [#allocation5], 10
    %1303 = vst.msk [vmem:[%s1302] sm:$0x3] %vm1037, %v1300
    %s1304 = scalar_lea.vmem [#allocation4], 12
    %v1305 = vld [vmem:[%s1304] sm:$0x3]
    %v1306 = vsel %vm176, %v1300, 0
    %1308 = vmatpush.msra.mxu0 0.0
    %1309 = vmatpush.msra.mxu0 0.0
    %1310 = vmatpush.msra.mxu0 0.0
    %1311 = vmatpush.msra.mxu0 0.0
    %1312 = vmatpush.msra.mxu0 0.0
    %1313 = vmatpush.msra.mxu0 0.0
    %1314 = vmatpush.msra.mxu0 0.0
    %1315 = vmatpush.msra.mxu0 0.0
    %1316 = vmatpush.msra.mxu0 0.0
    %1317 = vmatpush.msra.mxu0 0.0
    %1318 = vmatpush.msra.mxu0 0.0
    %1319 = vmatpush.msra.mxu0 0.0
    %1320 = vmatpush.msra.mxu0 0.0
    %1321 = vmatpush.msra.mxu0 0.0
    %1322 = vmatpush.msra.mxu0 0.0
    %1323 = vmatpush.msra.mxu0 %v986
    %1324 = vmatmul.f32.gmra.mxu0 %v1306
    %v1325 = vpop.f32.mrf.mxu0
    %v1326 = vadd.f32 0.0, %v1325
    %1327 = vdwg.mxu0
    %v1328 = vadd.f32 %v1305, %v1326
    %v1329 = vmul.f32 %v1328, 0.5
    %v1330 = vtanh.pop %v1329
    %v1331 = vmul.f32 %v1330, 0.5
    %v1332 = vadd.f32 %v1331, 0.5
    %v1333 = vtanh.pop %v1328
    %v1334 = vmul.f32 %v1332, %v1291
    %1336 = vrot.lane.b32.xlu0 %v1333, 112
    %v1337 = vpop.permute.xlu0 %1336
    %v1339 = vmul.f32 %v1332, %v1337
    %1341 = vrot.lane.b32.xlu0 %v1339, 8
    %v1342 = vpop.permute.xlu0 %1341
    %v1344 = vadd.f32 %v1334, %v1342
    %v1345 = vtanh.pop %v1344
    %1347 = vrot.lane.b32.xlu0 %v1345, 16
    %v1348 = vpop.permute.xlu0 %1347
    %v1350 = vmul.f32 %v1332, %v1348
    %1352 = vrot.lane.b32.xlu0 %v1350, 104
    %v1353 = vpop.permute.xlu0 %1352
    %s1355 = scalar_lea.vmem [#allocation5], 12
    %1356 = vst.msk [vmem:[%s1355] sm:$0x3] %vm1037, %v1353
    %s1357 = scalar_lea.vmem [#allocation4], 14
    %v1358 = vld [vmem:[%s1357] sm:$0x3]
    %v1359 = vsel %vm176, %v1353, 0
    %1361 = vmatpush.msra.mxu0 0.0
    %1362 = vmatpush.msra.mxu0 0.0
    %1363 = vmatpush.msra.mxu0 0.0
    %1364 = vmatpush.msra.mxu0 0.0
    %1365 = vmatpush.msra.mxu0 0.0
    %1366 = vmatpush.msra.mxu0 0.0
    %1367 = vmatpush.msra.mxu0 0.0
    %1368 = vmatpush.msra.mxu0 0.0
    %1369 = vmatpush.msra.mxu0 0.0
    %1370 = vmatpush.msra.mxu0 0.0
    %1371 = vmatpush.msra.mxu0 0.0
    %1372 = vmatpush.msra.mxu0 0.0
    %1373 = vmatpush.msra.mxu0 0.0
    %1374 = vmatpush.msra.mxu0 0.0
    %1375 = vmatpush.msra.mxu0 0.0
    %1376 = vmatpush.msra.mxu0 %v986
    %1377 = vmatmul.f32.gmra.mxu0 %v1359
    %v1378 = vpop.f32.mrf.mxu0
    %v1379 = vadd.f32 0.0, %v1378
    %1380 = vdwg.mxu0
    %v1381 = vadd.f32 %v1358, %v1379
    %v1382 = vmul.f32 %v1381, 0.5
    %v1383 = vtanh.pop %v1382
    %v1384 = vmul.f32 %v1383, 0.5
    %v1385 = vadd.f32 %v1384, 0.5
    %v1386 = vtanh.pop %v1381
    %v1387 = vmul.f32 %v1385, %v1344
    %1389 = vrot.lane.b32.xlu0 %v1386, 112
    %v1390 = vpop.permute.xlu0 %1389
    %v1392 = vmul.f32 %v1385, %v1390
    %1394 = vrot.lane.b32.xlu0 %v1392, 8
    %v1395 = vpop.permute.xlu0 %1394
    %v1397 = vadd.f32 %v1387, %v1395
    %v1398 = vtanh.pop %v1397
    %1400 = vrot.lane.b32.xlu0 %v1398, 16
    %v1401 = vpop.permute.xlu0 %1400
    %v1403 = vmul.f32 %v1385, %v1401
    %1405 = vrot.lane.b32.xlu0 %v1403, 104
    %v1406 = vpop.permute.xlu0 %1405
    %s1408 = scalar_lea.vmem [#allocation5], 14
    %1409 = vst.msk [vmem:[%s1408] sm:$0x3] %vm1037, %v1406
    %v1410 = vld [vmem:[#allocation5] sm:$0x1]
    %v1411 = vld [vmem:[#allocation5 + $0x2] sm:$0x1]
    %v1412 = vld [vmem:[#allocation5 + $0x4] sm:$0x1]
    %v1413 = vld [vmem:[#allocation5 + $0x6] sm:$0x1]
    %v1414 = vld [vmem:[#allocation5 + $0x8] sm:$0x1]
    %v1415 = vld [vmem:[#allocation5 + $0xa] sm:$0x1]
    %v1416 = vld [vmem:[#allocation5 + $0xc] sm:$0x1]
    %v1417 = vld [vmem:[#allocation5 + $0xe] sm:$0x1]
    %v1426 = vrot.slane %v1411, 7
    %v1427 = vsel %vm735, %v1426, %v1410
    %v1428 = vrot.slane %v1412, 6
    %v1429 = vsel %vm738, %v1428, %v1427
    %v1430 = vrot.slane %v1413, 5
    %v1431 = vsel %vm741, %v1430, %v1429
    %v1432 = vrot.slane %v1414, 4
    %v1433 = vsel %vm744, %v1432, %v1431
    %v1434 = vrot.slane %v1415, 3
    %v1435 = vsel %vm747, %v1434, %v1433
    %v1436 = vrot.slane %v1416, 2
    %v1437 = vsel %vm750, %v1436, %v1435
    %v1438 = vrot.slane %v1417, 1
    %v1439 = vsel %vm753, %v1438, %v1437
    %1441 = vst.msk [vmem:[%s11] sm:$0xff] %vm176, %v1439
    %v1442 = vld [vmem:[#allocation5 + $0x1] sm:$0x1]
    %v1443 = vld [vmem:[#allocation5 + $0x3] sm:$0x1]
    %v1444 = vld [vmem:[#allocation5 + $0x5] sm:$0x1]
    %v1445 = vld [vmem:[#allocation5 + $0x7] sm:$0x1]
    %v1446 = vld [vmem:[#allocation5 + $0x9] sm:$0x1]
    %v1447 = vld [vmem:[#allocation5 + $0xb] sm:$0x1]
    %v1448 = vld [vmem:[#allocation5 + $0xd] sm:$0x1]
    %v1449 = vld [vmem:[#allocation5 + $0xf] sm:$0x1]
    %v1458 = vrot.slane %v1443, 7
    %v1459 = vsel %vm735, %v1458, %v1442
    %v1460 = vrot.slane %v1444, 6
    %v1461 = vsel %vm738, %v1460, %v1459
    %v1462 = vrot.slane %v1445, 5
    %v1463 = vsel %vm741, %v1462, %v1461
    %v1464 = vrot.slane %v1446, 4
    %v1465 = vsel %vm744, %v1464, %v1463
    %v1466 = vrot.slane %v1447, 3
    %v1467 = vsel %vm747, %v1466, %v1465
    %v1468 = vrot.slane %v1448, 2
    %v1469 = vsel %vm750, %v1468, %v1467
    %v1470 = vrot.slane %v1449, 1
    %v1471 = vsel %vm753, %v1470, %v1469
    %s1473 = scalar_lea.vmem %s11, 8
    %1474 = vst.msk [vmem:[%s1473] sm:$0xff] %vm176, %v1471
    // Predicated region
    $region82: #{recurrent_autoencoder_forward.1} parent=1 // pred_check
      _
    $region83: #{recurrent_autoencoder_forward.1} parent=1 // pred_check_branch
      %1476 = sbr.rel (0) target = $region85
    $region84: #{recurrent_autoencoder_forward.1} parent=1 // pred_region
      _
    $region85: #{recurrent_autoencoder_forward.1} parent=1 // pred_fallthru
      _
    // Predicated region
    $region86: #{recurrent_autoencoder_forward.1} parent=1 // pred_check
      _
    $region87: #{recurrent_autoencoder_forward.1} parent=1 // pred_check_branch
      %1478 = sbr.rel (0) target = $region89
    $region88: #{recurrent_autoencoder_forward.1} parent=1 // pred_region
      _
    $region89: #{recurrent_autoencoder_forward.1} parent=1 // pred_fallthru
      _
    %1479 = vsyncpa [#allocation7], 1
    %1480 = vsyncpa [#allocation9], 1
    %1481 = vsyncpa [#allocation12], 1
    %1482 = vsyncpa [#allocation15], 1
    %1483 = vsyncpa [#allocation18], 1

</llo_original>
